<compile_context>
chip_gen: v5e
topology: v5e:2x2
jax: 0.10.0
libtpu: 0.0.40
codegen_flags: <defaults>
</compile_context>

<pallas_src>
import jax
import jax.numpy as jnp
import numpy as np
from jax.experimental import pallas as pl
from jax.experimental.pallas import tpu as pltpu

EMBEDDING_DIM = 16
# (in_ch, out_ch, kernel_size, stride, padding) per ConvTranspose1d layer.
DECODER_CONFIG = [(32, 24, 4, 2, 1), (24, 16, 4, 2, 1), (16, 8, 3, 1, 1)]

_E = EMBEDDING_DIM              # 16
_C0 = DECODER_CONFIG[0][0]      # 32
_C1 = DECODER_CONFIG[0][1]      # 24
_C2 = DECODER_CONFIG[1][1]      # 16
_C3 = DECODER_CONFIG[2][1]      # 8

# ----- packed-operand layout (shared by the wrapper packer and the kernel) ----
_SLAB_W = 64
# weight slab row offsets (all multiples of 8)
_ROW_EMB = 0                    # emb_w            (16,  32)
_ROW_W0 = _ROW_EMB + _E         # 16  : layer0     (96,  48)
_ROW_W1 = _ROW_W0 + 3 * _C0     # 112 : layer1     (144, 64)
_ROW_W2T = _ROW_W1 + 6 * _C1    # 256 : layer2^T   (8,   48)
_W_ROWS = _ROW_W2T + _C3        # 264
# vector slab: each (1, C) vector parked on its own 8-row block; b2 as a column.
(_V_EMB_B, _V_B0, _V_G0, _V_BB0, _V_B1, _V_G1, _V_BB1, _V_B2) = (
    8 * i for i in range(8))
_V_ROWS = 64


# ------------------------- in-kernel building blocks ------------------------ #

def _win3(x, row_mod, rows_per_batch):
    """3-tap im2col window over the WHOLE (N*L, C) block in one shot:
    window[r] = [x[r-1] | x[r] | x[r+1]]; taps that would cross a batch
    boundary are zeroed via the precomputed row mask (row_mod = row % L)."""
    prev = jnp.where(row_mod == 0, 0.0, jnp.roll(x, 1, axis=0))
    nxt = jnp.where(row_mod == rows_per_batch - 1, 0.0, jnp.roll(x, -1, axis=0))
    return jnp.concatenate([prev, x, nxt], axis=1)


def _bn_phase_blocked(y, n_phases, gamma_t, beta_t, inv_count):
    """Training-mode BatchNorm1d (batch stats, biased variance, eps=1e-5) on a
    phase-blocked activation: columns are n_phases groups of C channels, so the
    per-channel statistics pool the row reduction across the phase groups.
    gamma_t / beta_t are the affine params pre-tiled per phase at trace time.
    LeakyReLU(1.0) is the identity, so no activation op follows."""
    c = y.shape[1] // n_phases
    s = jnp.sum(y, axis=0, keepdims=True)
    s_c = s[:, 0:c]
    for p in range(1, n_phases):
        s_c = s_c + s[:, p * c:(p + 1) * c]
    mean = jnp.concatenate([s_c * inv_count] * n_phases, axis=1)
    yc = y - mean
    ss = jnp.sum(yc * yc, axis=0, keepdims=True)
    v_c = ss[:, 0:c]
    for p in range(1, n_phases):
        v_c = v_c + ss[:, p * c:(p + 1) * c]
    var = jnp.concatenate([v_c * inv_count] * n_phases, axis=1)
    return yc * jax.lax.rsqrt(var + 1e-5) * gamma_t + beta_t


# -------------------------------- fused kernel ------------------------------ #

def _decoder_fused_kernel(e_ref, w_ref, vec_ref, o_ref):
    n_batch = o_ref.shape[0]
    t = e_ref.shape[2]
    nt = n_batch * t
    l_last = 4 * t                      # two stride-2 layers, one stride-1
    n4t = n_batch * l_last

    # Packed operands: static ref slices (zero-cost views, 2 slab DMAs total).
    emb_w = w_ref[_ROW_EMB:_ROW_EMB + _E, 0:_C0]              # (16, 32)
    w0 = w_ref[_ROW_W0:_ROW_W0 + 3 * _C0, 0:2 * _C1]          # (96, 48)
    w1 = w_ref[_ROW_W1:_ROW_W1 + 6 * _C1, 0:4 * _C2]          # (144, 64)
    w2t = w_ref[_ROW_W2T:_ROW_W2T + _C3, 0:3 * _C2]           # (8, 48)
    emb_b = vec_ref[_V_EMB_B:_V_EMB_B + 1, 0:_C0]
    b0 = vec_ref[_V_B0:_V_B0 + 1, 0:2 * _C1]
    g0 = vec_ref[_V_G0:_V_G0 + 1, 0:2 * _C1]
    bb0 = vec_ref[_V_BB0:_V_BB0 + 1, 0:2 * _C1]
    b1 = vec_ref[_V_B1:_V_B1 + 1, 0:4 * _C2]
    g1 = vec_ref[_V_G1:_V_G1 + 1, 0:4 * _C2]
    bb1 = vec_ref[_V_BB1:_V_BB1 + 1, 0:4 * _C2]
    b2c = vec_ref[_V_B2:_V_B2 + _C3, 0:1]                     # (8, 1)

    # In-kernel NCL -> (N*T, E) prep (was a separate XLA transpose kernel).
    x = jnp.concatenate([e_ref[n].T for n in range(n_batch)], axis=0)  # (NT, 16)

    # decoder_embed: Linear(E -> C0).
    # TODO(synk): fold emb_w/emb_b into w0 at trace time once the in-kernel dots
    # run at Precision.HIGHEST; at default MXU precision the refold would stop
    # tracking the unfused f32 reference to 1e-4.
    x = jnp.dot(x, emb_w, preferred_element_type=jnp.float32) + emb_b   # (NT, 32)

    m_t = jax.lax.broadcasted_iota(jnp.int32, (nt, 1), 0) % t

    # Layer 0: ConvTranspose1d(32->24, K=4, s=2, p=1) as one polyphase matmul.
    # Output stays PHASE-BLOCKED: (NT, 48) = [time 2m | time 2m+1] col groups.
    y = jnp.dot(_win3(x, m_t, t), w0, preferred_element_type=jnp.float32) + b0
    y = _bn_phase_blocked(y, 2, g0, bb0, 1.0 / (n_batch * 2 * t))

    # Layer 1: ConvTranspose1d(24->16, K=4, s=2, p=1) applied directly to the
    # phase-blocked rows (the interleave is folded into the weight stacking).
    # Output 4-phase blocked: (NT, 64) = times 4m, 4m+1, 4m+2, 4m+3.
    y = jnp.dot(_win3(y, m_t, t), w1, preferred_element_type=jnp.float32) + b1
    y = _bn_phase_blocked(y, 4, g1, bb1, 1.0 / (n_batch * 4 * t))

    # Single deferred physical time-interleave: 4-phase (NT, 64) -> (N*4T, 16),
    # whole block: broadcast rows x4, then one iota-select over phase columns.
    rep = jnp.broadcast_to(y[:, None, :], (nt, 4, 4 * _C2)).reshape(n4t, 4 * _C2)
    p_idx = jax.lax.broadcasted_iota(jnp.int32, (n4t, 1), 0) % 4
    x2 = jnp.where(p_idx == 0, rep[:, 0:_C2],
         jnp.where(p_idx == 1, rep[:, _C2:2 * _C2],
         jnp.where(p_idx == 2, rep[:, 2 * _C2:3 * _C2],
                   rep[:, 3 * _C2:4 * _C2])))                           # (N4T, 16)

    # Layer 2: ConvTranspose1d(16->8, K=3, s=1, p=1) as ONE transposed dot so the
    # result is already channels-first; the NCL emit is N static lane slices.
    m_l = jax.lax.broadcasted_iota(jnp.int32, (n4t, 1), 0) % l_last
    win = _win3(x2, m_l, l_last)                                        # (N4T, 48)
    z = jnp.dot(w2t, win.T, preferred_element_type=jnp.float32) + b2c   # (8, N4T)
    for n in range(n_batch):
        o_ref[n] = z[:, n * l_last:(n + 1) * l_last].astype(o_ref.dtype)


# --------------------------- weight prep (trace time) ----------------------- #

def _stack_polyphase_s2(w):
    """torch ConvTranspose1d weight (C_in, C_out, 4), stride 2, padding 1 ->
    (3*C_in, 2*C_out) against the window [x[m-1] | x[m] | x[m+1]]:
      even cols (time 2m):   x[m-1] @ w3 + x[m]   @ w1
      odd  cols (time 2m+1): x[m]   @ w2 + x[m+1] @ w0
    """
    cin, cout, k = w.shape
    assert k == 4
    zero = jnp.zeros((cin, cout), w.dtype)
    even = jnp.concatenate([w[:, :, 3], w[:, :, 1], zero], axis=0)
    odd = jnp.concatenate([zero, w[:, :, 2], w[:, :, 0]], axis=0)
    return jnp.concatenate([even, odd], axis=1)


def _stack_polyphase_s2_on_phase_blocked(w):
    """Layer-1 weight for a PHASE-BLOCKED input (row m holds [x[2m] | x[2m+1]]).
    Window row blocks (C_in rows each): B0..B5 = x[2m-2], ..., x[2m+3].
    Output column groups (C_out each) are the four output phases 4m+r:
      r=0: B1@w3 + B2@w1      r=1: B2@w2 + B3@w0
      r=2: B2@w3 + B3@w1      r=3: B3@w2 + B4@w0
    -> (6*C_in, 4*C_out); the previous layer's time-interleave is folded into
    this stacking instead of being a per-batch data relayout.
    """
    cin, cout, k = w.shape
    assert k == 4
    z = jnp.zeros((cin, cout), w.dtype)
    w0_, w1_, w2_, w3_ = (w[:, :, i] for i in range(4))
    r0 = jnp.concatenate([z, w3_, w1_, z, z, z], axis=0)
    r1 = jnp.concatenate([z, z, w2_, w0_, z, z], axis=0)
    r2 = jnp.concatenate([z, z, w3_, w1_, z, z], axis=0)
    r3 = jnp.concatenate([z, z, z, w2_, w0_, z], axis=0)
    return jnp.concatenate([r0, r1, r2, r3], axis=1)       # (6*cin, 4*cout)


def _stack_s1_k3(w):
    """torch ConvTranspose1d weight (C_in, C_out, 3), stride 1, padding 1 ->
    (3*C_in, C_out):  out[t] = x[t-1]@w2 + x[t]@w1 + x[t+1]@w0."""
    return jnp.concatenate([w[:, :, 2], w[:, :, 1], w[:, :, 0]], axis=0)


def _pad_cols(w, width=_SLAB_W):
    return jnp.pad(w.astype(jnp.float32), ((0, 0), (0, width - w.shape[1])))


def _vec_block(v, width=_SLAB_W):
    return jnp.zeros((8, width), jnp.float32).at[0, :v.shape[0]].set(v)


def _pack_operands(params):
    """Pack all weights into one (264, 64) slab and all per-channel vectors
    (pre-tiled per output phase) into one (64, 64) slab -> 2 input DMAs."""
    l0, l1, l2 = params["layers"]
    w_slab = jnp.concatenate([
        _pad_cols(params["emb_w"]),                                # [0, 16)
        _pad_cols(_stack_polyphase_s2(l0["w"])),                   # [16, 112)
        _pad_cols(_stack_polyphase_s2_on_phase_blocked(l1["w"])),  # [112, 256)
        _pad_cols(jnp.transpose(_stack_s1_k3(l2["w"]))),           # [256, 264)
    ], axis=0)
    vecs = [
        params["emb_b"],
        jnp.tile(l0["b"], 2), jnp.tile(l0["gamma"], 2), jnp.tile(l0["beta"], 2),
        jnp.tile(l1["b"], 4), jnp.tile(l1["gamma"], 4), jnp.tile(l1["beta"], 4),
    ]
    v_slab = jnp.concatenate(
        [_vec_block(v) for v in vecs]
        + [jnp.zeros((8, _SLAB_W), jnp.float32).at[:, 0].set(l2["b"])], axis=0)
    return w_slab, v_slab


# ---------------------------------- wrapper --------------------------------- #

def decoder_forward(e, params):
    """e: (N, embedding_dim, T) channels-first, matching the PyTorch module.
    Returns the reconstruction in channels-first (N, C_last, 4*T) layout."""
    n, emb, t = e.shape
    assert emb == _E
    (_, _, k0, s0, p0), (_, _, k1, s1, p1), (_, c_last, k2, s2, p2) = DECODER_CONFIG
    # The fused kernel is specialised to this decoder architecture.
    assert (k0, s0, p0) == (4, 2, 1) and (k1, s1, p1) == (4, 2, 1)
    assert (k2, s2, p2) == (3, 1, 1)

    w_slab, v_slab = _pack_operands(params)

    # Single fused kernel: no grid, everything resident in VMEM, 3 input DMAs.
    return pl.pallas_call(
        _decoder_fused_kernel,
        out_shape=jax.ShapeDtypeStruct((n, c_last, 4 * t), jnp.float32),
        in_specs=[pl.BlockSpec(memory_space=pltpu.MemorySpace.VMEM)] * 3,
        out_specs=pl.BlockSpec(memory_space=pltpu.MemorySpace.VMEM),
    )(e.astype(jnp.float32), w_slab, v_slab)


# ----------------------------- pure-JAX reference --------------------------- #

def ref_forward(e, params):
    x = jnp.transpose(e, (0, 2, 1)).astype(jnp.float32)
    x = x @ params["emb_w"] + params["emb_b"]
    n_layers = len(DECODER_CONFIG)
    for i, (cfg, lp) in enumerate(zip(DECODER_CONFIG, params["layers"])):
        _, cout, K, s, p = cfg
        N, L, _ = x.shape
        Lfull = (L - 1) * s + K
        y = jnp.einsum("nlc,cok->nlok", x, lp["w"])
        out = jnp.zeros((N, Lfull, cout), jnp.float32)
        for k in range(K):
            out = out.at[:, k:k + (L - 1) * s + 1:s, :].add(y[:, :, :, k])
        L_out = (L - 1) * s - 2 * p + K
        x = out[:, p:p + L_out, :] + lp["b"][None, None, :]
        if i < n_layers - 1:
            mean = jnp.mean(x, axis=(0, 1), keepdims=True)
            var = jnp.mean((x - mean) ** 2, axis=(0, 1), keepdims=True)
            x = (x - mean) * jax.lax.rsqrt(var + 1e-5)
            x = x * lp["gamma"][None, None, :] + lp["beta"][None, None, :]
            # LeakyReLU(1.0) == identity
    return jnp.transpose(x, (0, 2, 1))


# ----------------------------------- params --------------------------------- #

def init_params(key):
    keys = jax.random.split(key, 2 + 3 * len(DECODER_CONFIG))
    c0 = DECODER_CONFIG[0][0]
    params = {
        "emb_w": 0.1 * jax.random.normal(keys[0], (EMBEDDING_DIM, c0), jnp.float32),
        "emb_b": 0.1 * jax.random.normal(keys[1], (c0,), jnp.float32),
        "layers": [],
    }
    kidx = 2
    for (cin, cout, K, s, p) in DECODER_CONFIG:
        w = 0.1 * jax.random.normal(keys[kidx], (cin, cout, K), jnp.float32)
        b = 0.1 * jax.random.normal(keys[kidx + 1], (cout,), jnp.float32)
        gb = jax.random.normal(keys[kidx + 2], (2, cout), jnp.float32)
        params["layers"].append({
            "w": w, "b": b,
            "gamma": 1.0 + 0.1 * gb[0], "beta": 0.1 * gb[1],
        })
        kidx += 3
    return params


if __name__ == "__main__":
    key = jax.random.PRNGKey(0)
    pkey, xkey = jax.random.split(key)
    params = init_params(pkey)

    N, T = 2, 8
    e = jax.random.normal(xkey, (N, EMBEDDING_DIM, T), jnp.float32)

    fwd = jax.jit(decoder_forward)
    out = jax.block_until_ready(fwd(e, params))
    ref = jax.block_until_ready(ref_forward(e, params))

    # T=8 -> 16 -> 32 -> 32; final channels = 8  =>  output (N, 8, 32) in NCL.
    assert out.shape == (N, DECODER_CONFIG[-1][1], 4 * T), out.shape
    np.testing.assert_allclose(np.asarray(out), np.asarray(ref), rtol=1e-4, atol=1e-4)
    print("KERNEL_OK")
</pallas_src>

<mosaic_0001>
module attributes {stable_mosaic.version = 11 : i64} {
  func.func @_decoder_fused_kernel(%arg0: memref<2x16x8xf32, #tpu.memory_space<vmem>>, %arg1: memref<264x64xf32, #tpu.memory_space<vmem>>, %arg2: memref<64x64xf32, #tpu.memory_space<vmem>>, %arg3: memref<2x8x32xf32, #tpu.memory_space<vmem>>) attributes {dimension_semantics = [], scalar_prefetch = 0 : i64, scratch_operands = 0 : i64, tpu.core_type = #tpu.core_type<tc>} {
    %c0 = arith.constant 0 : index
    %c0_0 = arith.constant 0 : index
    %0 = vector.load %arg1[%c0, %c0_0] : memref<264x64xf32, #tpu.memory_space<vmem>>, vector<16x32xf32>
    %c16 = arith.constant 16 : index
    %c0_1 = arith.constant 0 : index
    %1 = vector.load %arg1[%c16, %c0_1] : memref<264x64xf32, #tpu.memory_space<vmem>>, vector<96x48xf32>
    %c112 = arith.constant 112 : index
    %c0_2 = arith.constant 0 : index
    %2 = vector.load %arg1[%c112, %c0_2] : memref<264x64xf32, #tpu.memory_space<vmem>>, vector<144x64xf32>
    %c256 = arith.constant 256 : index
    %c0_3 = arith.constant 0 : index
    %3 = vector.load %arg1[%c256, %c0_3] : memref<264x64xf32, #tpu.memory_space<vmem>>, vector<8x48xf32>
    %c0_4 = arith.constant 0 : index
    %c0_5 = arith.constant 0 : index
    %4 = vector.load %arg2[%c0_4, %c0_5] : memref<64x64xf32, #tpu.memory_space<vmem>>, vector<1x32xf32>
    %c8 = arith.constant 8 : index
    %c0_6 = arith.constant 0 : index
    %5 = vector.load %arg2[%c8, %c0_6] : memref<64x64xf32, #tpu.memory_space<vmem>>, vector<1x48xf32>
    %c16_7 = arith.constant 16 : index
    %c0_8 = arith.constant 0 : index
    %6 = vector.load %arg2[%c16_7, %c0_8] : memref<64x64xf32, #tpu.memory_space<vmem>>, vector<1x48xf32>
    %c24 = arith.constant 24 : index
    %c0_9 = arith.constant 0 : index
    %7 = vector.load %arg2[%c24, %c0_9] : memref<64x64xf32, #tpu.memory_space<vmem>>, vector<1x48xf32>
    %c32 = arith.constant 32 : index
    %c0_10 = arith.constant 0 : index
    %8 = vector.load %arg2[%c32, %c0_10] : memref<64x64xf32, #tpu.memory_space<vmem>>, vector<1x64xf32>
    %c40 = arith.constant 40 : index
    %c0_11 = arith.constant 0 : index
    %9 = vector.load %arg2[%c40, %c0_11] : memref<64x64xf32, #tpu.memory_space<vmem>>, vector<1x64xf32>
    %c48 = arith.constant 48 : index
    %c0_12 = arith.constant 0 : index
    %10 = vector.load %arg2[%c48, %c0_12] : memref<64x64xf32, #tpu.memory_space<vmem>>, vector<1x64xf32>
    %c56 = arith.constant 56 : index
    %c0_13 = arith.constant 0 : index
    %11 = vector.load %arg2[%c56, %c0_13] : memref<64x64xf32, #tpu.memory_space<vmem>>, vector<8x1xf32>
    %c0_14 = arith.constant 0 : index
    %c0_15 = arith.constant 0 : index
    %c0_16 = arith.constant 0 : index
    %12 = vector.load %arg0[%c0_14, %c0_15, %c0_16] : memref<2x16x8xf32, #tpu.memory_space<vmem>>, vector<1x16x8xf32>
    %13 = vector.shape_cast %12 : vector<1x16x8xf32> to vector<16x8xf32>
    %14 = tpu.transpose %13, [1, 0] : vector<16x8xf32> -> vector<8x16xf32>
    %c1 = arith.constant 1 : index
    %c0_17 = arith.constant 0 : index
    %c0_18 = arith.constant 0 : index
    %15 = vector.load %arg0[%c1, %c0_17, %c0_18] : memref<2x16x8xf32, #tpu.memory_space<vmem>>, vector<1x16x8xf32>
    %16 = vector.shape_cast %15 : vector<1x16x8xf32> to vector<16x8xf32>
    %17 = tpu.transpose %16, [1, 0] : vector<16x8xf32> -> vector<8x16xf32>
    %18 = tpu.concatenate %14, %17 in 0 : vector<8x16xf32>, vector<8x16xf32> -> vector<16x16xf32>
    %cst = arith.constant dense<0.000000e+00> : vector<16x32xf32>
    %19 = tpu.matmul %18, %0, %cst {dimension_numbers = #tpu.dot_dimension_numbers<[1], [0], [0], [1], [0, 0, 1, 1], [], []>} : vector<16x16xf32>, vector<16x32xf32>, vector<16x32xf32> -> vector<16x32xf32>
    %20 = vector.broadcast %4 : vector<1x32xf32> to vector<16x32xf32>
    %21 = arith.addf %19, %20 : vector<16x32xf32>
    %22 = tpu.iota {dimensions = array<i32: 0>} : vector<16x1xi32>
    %c8_i32 = arith.constant 8 : i32
    %c0_i32 = arith.constant 0 : i32
    %23 = arith.cmpi eq, %c8_i32, %c0_i32 : i32
    %c1_i32 = arith.constant 1 : i32
    %24 = arith.select %23, %c1_i32, %c8_i32 : i32
    %25 = vector.broadcast %24 : i32 to vector<16x1xi32>
    %26 = arith.remsi %22, %25 : vector<16x1xi32>
    %c0_i32_19 = arith.constant 0 : i32
    %27 = vector.broadcast %c0_i32_19 : i32 to vector<16x1xi32>
    %28 = arith.cmpi ne, %26, %27 : vector<16x1xi32>
    %c0_i32_20 = arith.constant 0 : i32
    %29 = vector.broadcast %c0_i32_20 : i32 to vector<16x1xi32>
    %30 = arith.cmpi slt, %26, %29 : vector<16x1xi32>
    %c0_i32_21 = arith.constant 0 : i32
    %31 = arith.cmpi slt, %24, %c0_i32_21 : i32
    %32 = vector.broadcast %31 : i1 to vector<16x1xi1>
    %33 = vector.broadcast %32 : vector<16x1xi1> to vector<16x1xi1>
    %34 = arith.xori %30, %33 : vector<16x1xi1>
    %35 = arith.andi %34, %28 : vector<16x1xi1>
    %36 = vector.broadcast %24 : i32 to vector<16x1xi32>
    %37 = arith.addi %26, %36 : vector<16x1xi32>
    %38 = arith.select %35, %37, %26 : vector<16x1xi1>, vector<16x1xi32>
    %c0_i32_22 = arith.constant 0 : i32
    %39 = vector.broadcast %c0_i32_22 : i32 to vector<16x1xi32>
    %40 = arith.cmpi eq, %38, %39 : vector<16x1xi32>
    %41 = vector.extract_strided_slice %21 {offsets = [15, 0], sizes = [1, 32], strides = [1, 1]} : vector<16x32xf32> to vector<1x32xf32>
    %42 = vector.extract_strided_slice %21 {offsets = [0, 0], sizes = [15, 32], strides = [1, 1]} : vector<16x32xf32> to vector<15x32xf32>
    %43 = tpu.concatenate %41, %42 in 0 : vector<1x32xf32>, vector<15x32xf32> -> vector<16x32xf32>
    %cst_23 = arith.constant 0.000000e+00 : f32
    %44 = vector.shape_cast %40 : vector<16x1xi1> to vector<16x1xi1>
    %45 = vector.broadcast %44 : vector<16x1xi1> to vector<16x32xi1>
    %46 = vector.broadcast %cst_23 : f32 to vector<16x32xf32>
    %47 = arith.select %45, %46, %43 : vector<16x32xi1>, vector<16x32xf32>
    %c7_i32 = arith.constant 7 : i32
    %48 = vector.broadcast %c7_i32 : i32 to vector<16x1xi32>
    %49 = arith.cmpi eq, %38, %48 : vector<16x1xi32>
    %50 = vector.extract_strided_slice %21 {offsets = [1, 0], sizes = [15, 32], strides = [1, 1]} : vector<16x32xf32> to vector<15x32xf32>
    %51 = vector.extract_strided_slice %21 {offsets = [0, 0], sizes = [1, 32], strides = [1, 1]} : vector<16x32xf32> to vector<1x32xf32>
    %52 = tpu.concatenate %50, %51 in 0 : vector<15x32xf32>, vector<1x32xf32> -> vector<16x32xf32>
    %cst_24 = arith.constant 0.000000e+00 : f32
    %53 = vector.shape_cast %49 : vector<16x1xi1> to vector<16x1xi1>
    %54 = vector.broadcast %53 : vector<16x1xi1> to vector<16x32xi1>
    %55 = vector.broadcast %cst_24 : f32 to vector<16x32xf32>
    %56 = arith.select %54, %55, %52 : vector<16x32xi1>, vector<16x32xf32>
    %57 = tpu.concatenate %47, %21, %56 in 1 : vector<16x32xf32>, vector<16x32xf32>, vector<16x32xf32> -> vector<16x96xf32>
    %cst_25 = arith.constant dense<0.000000e+00> : vector<16x48xf32>
    %58 = tpu.matmul %57, %1, %cst_25 {dimension_numbers = #tpu.dot_dimension_numbers<[1], [0], [0], [1], [0, 0, 1, 1], [], []>} : vector<16x96xf32>, vector<96x48xf32>, vector<16x48xf32> -> vector<16x48xf32>
    %59 = vector.broadcast %5 : vector<1x48xf32> to vector<16x48xf32>
    %60 = arith.addf %58, %59 : vector<16x48xf32>
    %cst_26 = arith.constant dense<0.000000e+00> : vector<48xf32>
    %61 = vector.multi_reduction <add>, %60, %cst_26 [0] : vector<16x48xf32> to vector<48xf32>
    %62 = vector.shape_cast %61 : vector<48xf32> to vector<1x48xf32>
    %63 = vector.extract_strided_slice %62 {offsets = [0, 0], sizes = [1, 24], strides = [1, 1]} : vector<1x48xf32> to vector<1x24xf32>
    %64 = vector.extract_strided_slice %62 {offsets = [0, 24], sizes = [1, 24], strides = [1, 1]} : vector<1x48xf32> to vector<1x24xf32>
    %65 = arith.addf %63, %64 : vector<1x24xf32>
    %cst_27 = arith.constant 3.125000e-02 : f32
    %66 = vector.broadcast %cst_27 : f32 to vector<1x24xf32>
    %67 = arith.mulf %65, %66 : vector<1x24xf32>
    %68 = tpu.concatenate %67, %67 in 1 : vector<1x24xf32>, vector<1x24xf32> -> vector<1x48xf32>
    %69 = vector.broadcast %68 : vector<1x48xf32> to vector<16x48xf32>
    %70 = arith.subf %60, %69 : vector<16x48xf32>
    %71 = arith.mulf %70, %70 : vector<16x48xf32>
    %cst_28 = arith.constant dense<0.000000e+00> : vector<48xf32>
    %72 = vector.multi_reduction <add>, %71, %cst_28 [0] : vector<16x48xf32> to vector<48xf32>
    %73 = vector.shape_cast %72 : vector<48xf32> to vector<1x48xf32>
    %74 = vector.extract_strided_slice %73 {offsets = [0, 0], sizes = [1, 24], strides = [1, 1]} : vector<1x48xf32> to vector<1x24xf32>
    %75 = vector.extract_strided_slice %73 {offsets = [0, 24], sizes = [1, 24], strides = [1, 1]} : vector<1x48xf32> to vector<1x24xf32>
    %76 = arith.addf %74, %75 : vector<1x24xf32>
    %cst_29 = arith.constant 3.125000e-02 : f32
    %77 = vector.broadcast %cst_29 : f32 to vector<1x24xf32>
    %78 = arith.mulf %76, %77 : vector<1x24xf32>
    %79 = tpu.concatenate %78, %78 in 1 : vector<1x24xf32>, vector<1x24xf32> -> vector<1x48xf32>
    %cst_30 = arith.constant 9.99999974E-6 : f32
    %80 = vector.broadcast %cst_30 : f32 to vector<1x48xf32>
    %81 = arith.addf %79, %80 : vector<1x48xf32>
    %82 = math.rsqrt %81 : vector<1x48xf32>
    %83 = vector.broadcast %82 : vector<1x48xf32> to vector<16x48xf32>
    %84 = arith.mulf %70, %83 : vector<16x48xf32>
    %85 = vector.broadcast %6 : vector<1x48xf32> to vector<16x48xf32>
    %86 = arith.mulf %84, %85 : vector<16x48xf32>
    %87 = vector.broadcast %7 : vector<1x48xf32> to vector<16x48xf32>
    %88 = arith.addf %86, %87 : vector<16x48xf32>
    %c0_i32_31 = arith.constant 0 : i32
    %89 = vector.broadcast %c0_i32_31 : i32 to vector<16x1xi32>
    %90 = arith.cmpi eq, %38, %89 : vector<16x1xi32>
    %91 = vector.extract_strided_slice %88 {offsets = [15, 0], sizes = [1, 48], strides = [1, 1]} : vector<16x48xf32> to vector<1x48xf32>
    %92 = vector.extract_strided_slice %88 {offsets = [0, 0], sizes = [15, 48], strides = [1, 1]} : vector<16x48xf32> to vector<15x48xf32>
    %93 = tpu.concatenate %91, %92 in 0 : vector<1x48xf32>, vector<15x48xf32> -> vector<16x48xf32>
    %cst_32 = arith.constant 0.000000e+00 : f32
    %94 = vector.shape_cast %90 : vector<16x1xi1> to vector<16x1xi1>
    %95 = vector.broadcast %94 : vector<16x1xi1> to vector<16x48xi1>
    %96 = vector.broadcast %cst_32 : f32 to vector<16x48xf32>
    %97 = arith.select %95, %96, %93 : vector<16x48xi1>, vector<16x48xf32>
    %c7_i32_33 = arith.constant 7 : i32
    %98 = vector.broadcast %c7_i32_33 : i32 to vector<16x1xi32>
    %99 = arith.cmpi eq, %38, %98 : vector<16x1xi32>
    %100 = vector.extract_strided_slice %88 {offsets = [1, 0], sizes = [15, 48], strides = [1, 1]} : vector<16x48xf32> to vector<15x48xf32>
    %101 = vector.extract_strided_slice %88 {offsets = [0, 0], sizes = [1, 48], strides = [1, 1]} : vector<16x48xf32> to vector<1x48xf32>
    %102 = tpu.concatenate %100, %101 in 0 : vector<15x48xf32>, vector<1x48xf32> -> vector<16x48xf32>
    %cst_34 = arith.constant 0.000000e+00 : f32
    %103 = vector.shape_cast %99 : vector<16x1xi1> to vector<16x1xi1>
    %104 = vector.broadcast %103 : vector<16x1xi1> to vector<16x48xi1>
    %105 = vector.broadcast %cst_34 : f32 to vector<16x48xf32>
    %106 = arith.select %104, %105, %102 : vector<16x48xi1>, vector<16x48xf32>
    %107 = tpu.concatenate %97, %88, %106 in 1 : vector<16x48xf32>, vector<16x48xf32>, vector<16x48xf32> -> vector<16x144xf32>
    %cst_35 = arith.constant dense<0.000000e+00> : vector<16x64xf32>
    %108 = tpu.matmul %107, %2, %cst_35 {dimension_numbers = #tpu.dot_dimension_numbers<[1], [0], [0], [1], [0, 0, 1, 1], [], []>} : vector<16x144xf32>, vector<144x64xf32>, vector<16x64xf32> -> vector<16x64xf32>
    %109 = vector.broadcast %8 : vector<1x64xf32> to vector<16x64xf32>
    %110 = arith.addf %108, %109 : vector<16x64xf32>
    %cst_36 = arith.constant dense<0.000000e+00> : vector<64xf32>
    %111 = vector.multi_reduction <add>, %110, %cst_36 [0] : vector<16x64xf32> to vector<64xf32>
    %112 = vector.shape_cast %111 : vector<64xf32> to vector<1x64xf32>
    %113 = vector.extract_strided_slice %112 {offsets = [0, 0], sizes = [1, 16], strides = [1, 1]} : vector<1x64xf32> to vector<1x16xf32>
    %114 = vector.extract_strided_slice %112 {offsets = [0, 16], sizes = [1, 16], strides = [1, 1]} : vector<1x64xf32> to vector<1x16xf32>
    %115 = arith.addf %113, %114 : vector<1x16xf32>
    %116 = vector.extract_strided_slice %112 {offsets = [0, 32], sizes = [1, 16], strides = [1, 1]} : vector<1x64xf32> to vector<1x16xf32>
    %117 = arith.addf %115, %116 : vector<1x16xf32>
    %118 = vector.extract_strided_slice %112 {offsets = [0, 48], sizes = [1, 16], strides = [1, 1]} : vector<1x64xf32> to vector<1x16xf32>
    %119 = arith.addf %117, %118 : vector<1x16xf32>
    %cst_37 = arith.constant 1.562500e-02 : f32
    %120 = vector.broadcast %cst_37 : f32 to vector<1x16xf32>
    %121 = arith.mulf %119, %120 : vector<1x16xf32>
    %122 = tpu.concatenate %121, %121, %121, %121 in 1 : vector<1x16xf32>, vector<1x16xf32>, vector<1x16xf32>, vector<1x16xf32> -> vector<1x64xf32>
    %123 = vector.broadcast %122 : vector<1x64xf32> to vector<16x64xf32>
    %124 = arith.subf %110, %123 : vector<16x64xf32>
    %125 = arith.mulf %124, %124 : vector<16x64xf32>
    %cst_38 = arith.constant dense<0.000000e+00> : vector<64xf32>
    %126 = vector.multi_reduction <add>, %125, %cst_38 [0] : vector<16x64xf32> to vector<64xf32>
    %127 = vector.shape_cast %126 : vector<64xf32> to vector<1x64xf32>
    %128 = vector.extract_strided_slice %127 {offsets = [0, 0], sizes = [1, 16], strides = [1, 1]} : vector<1x64xf32> to vector<1x16xf32>
    %129 = vector.extract_strided_slice %127 {offsets = [0, 16], sizes = [1, 16], strides = [1, 1]} : vector<1x64xf32> to vector<1x16xf32>
    %130 = arith.addf %128, %129 : vector<1x16xf32>
    %131 = vector.extract_strided_slice %127 {offsets = [0, 32], sizes = [1, 16], strides = [1, 1]} : vector<1x64xf32> to vector<1x16xf32>
    %132 = arith.addf %130, %131 : vector<1x16xf32>
    %133 = vector.extract_strided_slice %127 {offsets = [0, 48], sizes = [1, 16], strides = [1, 1]} : vector<1x64xf32> to vector<1x16xf32>
    %134 = arith.addf %132, %133 : vector<1x16xf32>
    %cst_39 = arith.constant 1.562500e-02 : f32
    %135 = vector.broadcast %cst_39 : f32 to vector<1x16xf32>
    %136 = arith.mulf %134, %135 : vector<1x16xf32>
    %137 = tpu.concatenate %136, %136, %136, %136 in 1 : vector<1x16xf32>, vector<1x16xf32>, vector<1x16xf32>, vector<1x16xf32> -> vector<1x64xf32>
    %cst_40 = arith.constant 9.99999974E-6 : f32
    %138 = vector.broadcast %cst_40 : f32 to vector<1x64xf32>
    %139 = arith.addf %137, %138 : vector<1x64xf32>
    %140 = math.rsqrt %139 : vector<1x64xf32>
    %141 = vector.broadcast %140 : vector<1x64xf32> to vector<16x64xf32>
    %142 = arith.mulf %124, %141 : vector<16x64xf32>
    %143 = vector.broadcast %9 : vector<1x64xf32> to vector<16x64xf32>
    %144 = arith.mulf %142, %143 : vector<16x64xf32>
    %145 = vector.broadcast %10 : vector<1x64xf32> to vector<16x64xf32>
    %146 = arith.addf %144, %145 : vector<16x64xf32>
    %147 = vector.shape_cast %146 : vector<16x64xf32> to vector<16x1x64xf32>
    %148 = vector.shape_cast %147 : vector<16x1x64xf32> to vector<16x1x64xf32>
    %149 = vector.broadcast %148 : vector<16x1x64xf32> to vector<16x4x64xf32>
    %150 = vector.shape_cast %149 : vector<16x4x64xf32> to vector<64x64xf32>
    %151 = tpu.iota {dimensions = array<i32: 0>} : vector<64x1xi32>
    %c4_i32 = arith.constant 4 : i32
    %c0_i32_41 = arith.constant 0 : i32
    %152 = arith.cmpi eq, %c4_i32, %c0_i32_41 : i32
    %c1_i32_42 = arith.constant 1 : i32
    %153 = arith.select %152, %c1_i32_42, %c4_i32 : i32
    %154 = vector.broadcast %153 : i32 to vector<64x1xi32>
    %155 = arith.remsi %151, %154 : vector<64x1xi32>
    %c0_i32_43 = arith.constant 0 : i32
    %156 = vector.broadcast %c0_i32_43 : i32 to vector<64x1xi32>
    %157 = arith.cmpi ne, %155, %156 : vector<64x1xi32>
    %c0_i32_44 = arith.constant 0 : i32
    %158 = vector.broadcast %c0_i32_44 : i32 to vector<64x1xi32>
    %159 = arith.cmpi slt, %155, %158 : vector<64x1xi32>
    %c0_i32_45 = arith.constant 0 : i32
    %160 = arith.cmpi slt, %153, %c0_i32_45 : i32
    %161 = vector.broadcast %160 : i1 to vector<64x1xi1>
    %162 = vector.broadcast %161 : vector<64x1xi1> to vector<64x1xi1>
    %163 = arith.xori %159, %162 : vector<64x1xi1>
    %164 = arith.andi %163, %157 : vector<64x1xi1>
    %165 = vector.broadcast %153 : i32 to vector<64x1xi32>
    %166 = arith.addi %155, %165 : vector<64x1xi32>
    %167 = arith.select %164, %166, %155 : vector<64x1xi1>, vector<64x1xi32>
    %c0_i32_46 = arith.constant 0 : i32
    %168 = vector.broadcast %c0_i32_46 : i32 to vector<64x1xi32>
    %169 = arith.cmpi eq, %167, %168 : vector<64x1xi32>
    %170 = vector.extract_strided_slice %150 {offsets = [0, 0], sizes = [64, 16], strides = [1, 1]} : vector<64x64xf32> to vector<64x16xf32>
    %c1_i32_47 = arith.constant 1 : i32
    %171 = vector.broadcast %c1_i32_47 : i32 to vector<64x1xi32>
    %172 = arith.cmpi eq, %167, %171 : vector<64x1xi32>
    %173 = vector.extract_strided_slice %150 {offsets = [0, 16], sizes = [64, 16], strides = [1, 1]} : vector<64x64xf32> to vector<64x16xf32>
    %c2_i32 = arith.constant 2 : i32
    %174 = vector.broadcast %c2_i32 : i32 to vector<64x1xi32>
    %175 = arith.cmpi eq, %167, %174 : vector<64x1xi32>
    %176 = vector.extract_strided_slice %150 {offsets = [0, 32], sizes = [64, 16], strides = [1, 1]} : vector<64x64xf32> to vector<64x16xf32>
    %177 = vector.extract_strided_slice %150 {offsets = [0, 48], sizes = [64, 16], strides = [1, 1]} : vector<64x64xf32> to vector<64x16xf32>
    %178 = vector.shape_cast %175 : vector<64x1xi1> to vector<64x1xi1>
    %179 = vector.broadcast %178 : vector<64x1xi1> to vector<64x16xi1>
    %180 = arith.select %179, %176, %177 : vector<64x16xi1>, vector<64x16xf32>
    %181 = vector.shape_cast %172 : vector<64x1xi1> to vector<64x1xi1>
    %182 = vector.broadcast %181 : vector<64x1xi1> to vector<64x16xi1>
    %183 = arith.select %182, %173, %180 : vector<64x16xi1>, vector<64x16xf32>
    %184 = vector.shape_cast %169 : vector<64x1xi1> to vector<64x1xi1>
    %185 = vector.broadcast %184 : vector<64x1xi1> to vector<64x16xi1>
    %186 = arith.select %185, %170, %183 : vector<64x16xi1>, vector<64x16xf32>
    %187 = tpu.iota {dimensions = array<i32: 0>} : vector<64x1xi32>
    %c32_i32 = arith.constant 32 : i32
    %c0_i32_48 = arith.constant 0 : i32
    %188 = arith.cmpi eq, %c32_i32, %c0_i32_48 : i32
    %c1_i32_49 = arith.constant 1 : i32
    %189 = arith.select %188, %c1_i32_49, %c32_i32 : i32
    %190 = vector.broadcast %189 : i32 to vector<64x1xi32>
    %191 = arith.remsi %187, %190 : vector<64x1xi32>
    %c0_i32_50 = arith.constant 0 : i32
    %192 = vector.broadcast %c0_i32_50 : i32 to vector<64x1xi32>
    %193 = arith.cmpi ne, %191, %192 : vector<64x1xi32>
    %c0_i32_51 = arith.constant 0 : i32
    %194 = vector.broadcast %c0_i32_51 : i32 to vector<64x1xi32>
    %195 = arith.cmpi slt, %191, %194 : vector<64x1xi32>
    %c0_i32_52 = arith.constant 0 : i32
    %196 = arith.cmpi slt, %189, %c0_i32_52 : i32
    %197 = vector.broadcast %196 : i1 to vector<64x1xi1>
    %198 = vector.broadcast %197 : vector<64x1xi1> to vector<64x1xi1>
    %199 = arith.xori %195, %198 : vector<64x1xi1>
    %200 = arith.andi %199, %193 : vector<64x1xi1>
    %201 = vector.broadcast %189 : i32 to vector<64x1xi32>
    %202 = arith.addi %191, %201 : vector<64x1xi32>
    %203 = arith.select %200, %202, %191 : vector<64x1xi1>, vector<64x1xi32>
    %c0_i32_53 = arith.constant 0 : i32
    %204 = vector.broadcast %c0_i32_53 : i32 to vector<64x1xi32>
    %205 = arith.cmpi eq, %203, %204 : vector<64x1xi32>
    %206 = vector.extract_strided_slice %186 {offsets = [63, 0], sizes = [1, 16], strides = [1, 1]} : vector<64x16xf32> to vector<1x16xf32>
    %207 = vector.extract_strided_slice %186 {offsets = [0, 0], sizes = [63, 16], strides = [1, 1]} : vector<64x16xf32> to vector<63x16xf32>
    %208 = tpu.concatenate %206, %207 in 0 : vector<1x16xf32>, vector<63x16xf32> -> vector<64x16xf32>
    %cst_54 = arith.constant 0.000000e+00 : f32
    %209 = vector.shape_cast %205 : vector<64x1xi1> to vector<64x1xi1>
    %210 = vector.broadcast %209 : vector<64x1xi1> to vector<64x16xi1>
    %211 = vector.broadcast %cst_54 : f32 to vector<64x16xf32>
    %212 = arith.select %210, %211, %208 : vector<64x16xi1>, vector<64x16xf32>
    %c31_i32 = arith.constant 31 : i32
    %213 = vector.broadcast %c31_i32 : i32 to vector<64x1xi32>
    %214 = arith.cmpi eq, %203, %213 : vector<64x1xi32>
    %215 = vector.extract_strided_slice %186 {offsets = [1, 0], sizes = [63, 16], strides = [1, 1]} : vector<64x16xf32> to vector<63x16xf32>
    %216 = vector.extract_strided_slice %186 {offsets = [0, 0], sizes = [1, 16], strides = [1, 1]} : vector<64x16xf32> to vector<1x16xf32>
    %217 = tpu.concatenate %215, %216 in 0 : vector<63x16xf32>, vector<1x16xf32> -> vector<64x16xf32>
    %cst_55 = arith.constant 0.000000e+00 : f32
    %218 = vector.shape_cast %214 : vector<64x1xi1> to vector<64x1xi1>
    %219 = vector.broadcast %218 : vector<64x1xi1> to vector<64x16xi1>
    %220 = vector.broadcast %cst_55 : f32 to vector<64x16xf32>
    %221 = arith.select %219, %220, %217 : vector<64x16xi1>, vector<64x16xf32>
    %222 = tpu.concatenate %212, %186, %221 in 1 : vector<64x16xf32>, vector<64x16xf32>, vector<64x16xf32> -> vector<64x48xf32>
    %223 = tpu.transpose %222, [1, 0] : vector<64x48xf32> -> vector<48x64xf32>
    %cst_56 = arith.constant dense<0.000000e+00> : vector<8x64xf32>
    %224 = tpu.matmul %3, %223, %cst_56 {dimension_numbers = #tpu.dot_dimension_numbers<[1], [0], [0], [1], [0, 0, 1, 1], [], []>} : vector<8x48xf32>, vector<48x64xf32>, vector<8x64xf32> -> vector<8x64xf32>
    %225 = vector.broadcast %11 : vector<8x1xf32> to vector<8x64xf32>
    %226 = arith.addf %224, %225 : vector<8x64xf32>
    %227 = vector.extract_strided_slice %226 {offsets = [0, 0], sizes = [8, 32], strides = [1, 1]} : vector<8x64xf32> to vector<8x32xf32>
    %c0_57 = arith.constant 0 : index
    %c0_58 = arith.constant 0 : index
    %c0_59 = arith.constant 0 : index
    %228 = vector.load %arg3[%c0_57, %c0_58, %c0_59] : memref<2x8x32xf32, #tpu.memory_space<vmem>>, vector<1x8x32xf32>
    %229 = vector.shape_cast %228 : vector<1x8x32xf32> to vector<8x32xf32>
    %230 = vector.shape_cast %227 : vector<8x32xf32> to vector<1x8x32xf32>
    tpu.vector_store %arg3[%c0_57, %c0_58, %c0_59], %230 {strides = array<i32>} : memref<2x8x32xf32, #tpu.memory_space<vmem>>, vector<1x8x32xf32>,
    %231 = vector.extract_strided_slice %226 {offsets = [0, 32], sizes = [8, 32], strides = [1, 1]} : vector<8x64xf32> to vector<8x32xf32>
    %c1_60 = arith.constant 1 : index
    %c0_61 = arith.constant 0 : index
    %c0_62 = arith.constant 0 : index
    %232 = vector.load %arg3[%c1_60, %c0_61, %c0_62] : memref<2x8x32xf32, #tpu.memory_space<vmem>>, vector<1x8x32xf32>
    %233 = vector.shape_cast %232 : vector<1x8x32xf32> to vector<8x32xf32>
    %234 = vector.shape_cast %231 : vector<8x32xf32> to vector<1x8x32xf32>
    tpu.vector_store %arg3[%c1_60, %c0_61, %c0_62], %234 {strides = array<i32>} : memref<2x8x32xf32, #tpu.memory_space<vmem>>, vector<1x8x32xf32>,
    return
  }
}

</mosaic_0001>

<llo_original>
// kernel: tile.33
$region0: #{tile.33}
  #allocation0 [shape = 's32[1]{0}', space=sflag, size = 0x4, scoped, tag = 'scoped memory for tile.33']
  %s0 = inlined_call_operand.vmem [shape: f32[24], index: 0, kind: input, shape index: {}]
  %s1 = inlined_call_operand.vmem [shape: f32[2,24], index: 1, kind: output, shape index: {}]
  // Predicated region
  $region2: #{tile.33} parent=0 // pred_check
    _
  $region3: #{tile.33} parent=0 // pred_check_branch
    %3 = sbr.rel (0) target = $region5
  $region4: #{tile.33} parent=0 // pred_region
    _
  $region5: #{tile.33} parent=0 // pred_fallthru
    _
  %v4 = vld [vmem:[%s0] ss:$0 sm:$0xff]
  %5 = vst [vmem:[%s1] sm:$0x3] %v4

// kernel: tile.48
$region0: #{tile.48}
  #allocation0 [shape = 's32[1]{0}', space=sflag, size = 0x4, scoped, tag = 'scoped memory for tile.48']
  %s0 = inlined_call_operand.vmem [shape: f32[16], index: 0, kind: input, shape index: {}]
  %s1 = inlined_call_operand.vmem [shape: f32[4,16], index: 1, kind: output, shape index: {}]
  // Predicated region
  $region2: #{tile.48} parent=0 // pred_check
    _
  $region3: #{tile.48} parent=0 // pred_check_branch
    %3 = sbr.rel (0) target = $region5
  $region4: #{tile.48} parent=0 // pred_region
    _
  $region5: #{tile.48} parent=0 // pred_fallthru
    _
  %v4 = vld [vmem:[%s0] ss:$0 sm:$0xff]
  %5 = vst [vmem:[%s1] sm:$0xf] %v4

// kernel: decoder_forward.1
$region0: #{decoder_forward.1}
  #allocation0 [shape = 'u32[]', space=smem, size = 0x4, offset = 0x4, fixed_abs, tag = 'smem constant byte address 0x4 - core index']
  #allocation1 [shape = 'u32[72,128]{1,0:T(1,128)}', space=vmem, size = 0x9000, scoped, tag = 'internal scratch']
  %s0 = inlined_call_operand.vmem [shape: f32[2,16,8], index: 0, kind: input, shape index: {}]
  %s1 = inlined_call_operand.vmem [shape: f32[264,64], index: 1, kind: input, shape index: {}]
  %s2 = inlined_call_operand.vmem [shape: f32[64,64], index: 2, kind: input, shape index: {}]
  %s3 = inlined_call_operand.hbm [shape: f32[2,8,32], index: 3, kind: output, shape index: {}]
  %s4 = sld [smem:[#allocation0]]
  $region22: #{decoder_forward.1} parent=0
    _
  %s6 = ssub.s32 1, %s4
  %s7 = scalar_select 0, %s6, %s4
  $region1: #{decoder_forward.1} parent=0
    #allocation2 [shape = 'u8[8192]{0}', space=vmem, size = 0x2000, scoped, tag = 'output window, operand 0, single buffered']
    #allocation3 [shape = 's32[1]{0}', space=sflag, size = 0x4, scoped, tag = 'scoped memory for decoder_forward.1']
    %8 = vsyncpa [#allocation3], 0
    // Predicated region
    $region2: #{decoder_forward.1} parent=1 // pred_check
      _
    $region3: #{decoder_forward.1} parent=1 // pred_check_branch
      %10 = sbr.rel (0) target = $region5
    $region4: #{decoder_forward.1} parent=1 // pred_region
      _
    $region5: #{decoder_forward.1} parent=1 // pred_fallthru
      _
    // Predicated region
    $region6: #{decoder_forward.1} parent=1 // pred_check
      _
    $region7: #{decoder_forward.1} parent=1 // pred_check_branch
      %12 = sbr.rel (0) target = $region9
    $region8: #{decoder_forward.1} parent=1 // pred_region
      _
    $region9: #{decoder_forward.1} parent=1 // pred_fallthru
      _
    // Predicated region
    $region10: #{decoder_forward.1} parent=1 // pred_check
      _
    $region11: #{decoder_forward.1} parent=1 // pred_check_branch
      %14 = sbr.rel (0) target = $region13
    $region12: #{decoder_forward.1} parent=1 // pred_region
      _
    $region13: #{decoder_forward.1} parent=1 // pred_fallthru
      _
    %v15 = vld [vmem:[%s1] sm:$0xff]
    %v16 = vld [vmem:[%s1 + $0x8] sm:$0xff]
    %v17 = vld [vmem:[%s1 + $0x10] sm:$0xff]
    %v18 = vld [vmem:[%s1 + $0x18] sm:$0xff]
    %v19 = vld [vmem:[%s1 + $0x20] sm:$0xff]
    %v20 = vld [vmem:[%s1 + $0x28] sm:$0xff]
    %v21 = vld [vmem:[%s1 + $0x30] sm:$0xff]
    %v22 = vld [vmem:[%s1 + $0x38] sm:$0xff]
    %v23 = vld [vmem:[%s1 + $0x40] sm:$0xff]
    %v24 = vld [vmem:[%s1 + $0x48] sm:$0xff]
    %v25 = vld [vmem:[%s1 + $0x50] sm:$0xff]
    %v26 = vld [vmem:[%s1 + $0x58] sm:$0xff]
    %v27 = vld [vmem:[%s1 + $0x60] sm:$0xff]
    %v28 = vld [vmem:[%s1 + $0x68] sm:$0xff]
    %v29 = vld [vmem:[%s1 + $0x70] sm:$0xff]
    %v30 = vld [vmem:[%s1 + $0x78] sm:$0xff]
    %v31 = vld [vmem:[%s1 + $0x80] sm:$0xff]
    %v32 = vld [vmem:[%s1 + $0x88] sm:$0xff]
    %v33 = vld [vmem:[%s1 + $0x90] sm:$0xff]
    %v34 = vld [vmem:[%s1 + $0x98] sm:$0xff]
    %v35 = vld [vmem:[%s1 + $0xa0] sm:$0xff]
    %v36 = vld [vmem:[%s1 + $0xa8] sm:$0xff]
    %v37 = vld [vmem:[%s1 + $0xb0] sm:$0xff]
    %v38 = vld [vmem:[%s1 + $0xb8] sm:$0xff]
    %v39 = vld [vmem:[%s1 + $0xc0] sm:$0xff]
    %v40 = vld [vmem:[%s1 + $0xc8] sm:$0xff]
    %v41 = vld [vmem:[%s1 + $0xd0] sm:$0xff]
    %v42 = vld [vmem:[%s1 + $0xd8] sm:$0xff]
    %v43 = vld [vmem:[%s1 + $0xe0] sm:$0xff]
    %v44 = vld [vmem:[%s1 + $0xe8] sm:$0xff]
    %v45 = vld [vmem:[%s1 + $0xf0] sm:$0xff]
    %v46 = vld [vmem:[%s1 + $0xf8] sm:$0xff]
    %v47 = vld [vmem:[%s1 + $0x100] sm:$0xff]
    %v48 = vld [vmem:[%s2] sm:$0x1]
    %v49 = vld [vmem:[%s2 + $0x8] sm:$0x1]
    %v50 = vld [vmem:[%s2 + $0x10] sm:$0x1]
    %v51 = vld [vmem:[%s2 + $0x18] sm:$0x1]
    %v52 = vld [vmem:[%s2 + $0x20] sm:$0x1]
    %v53 = vld [vmem:[%s2 + $0x28] sm:$0x1]
    %v54 = vld [vmem:[%s2 + $0x30] sm:$0x1]
    %v55 = vld [vmem:[%s2 + $0x38] sm:$0xff]
    %v56 = vld [vmem:[%s0] sm:$0xff]
    %v57 = vld [vmem:[%s0 + $0x8] sm:$0xff]
    %58 = vxpose.xlu0.b32.start [1/16] %v56, 128
    %59 = vxpose.xlu0.b32.cont [2/16] %v57, 128
    %60 = vxpose.xlu0.b32.cont [3/16] 0.0, 128
    %61 = vxpose.xlu0.b32.cont [4/16] 0.0, 128
    %62 = vxpose.xlu0.b32.cont [5/16] 0.0, 128
    %63 = vxpose.xlu0.b32.cont [6/16] 0.0, 128
    %64 = vxpose.xlu0.b32.cont [7/16] 0.0, 128
    %65 = vxpose.xlu0.b32.cont [8/16] 0.0, 128
    %66 = vxpose.xlu0.b32.cont [9/16] 0.0, 128
    %67 = vxpose.xlu0.b32.cont [10/16] 0.0, 128
    %68 = vxpose.xlu0.b32.cont [11/16] 0.0, 128
    %69 = vxpose.xlu0.b32.cont [12/16] 0.0, 128
    %70 = vxpose.xlu0.b32.cont [13/16] 0.0, 128
    %71 = vxpose.xlu0.b32.cont [14/16] 0.0, 128
    %72 = vxpose.xlu0.b32.cont [15/16] 0.0, 128
    %73 = vxpose.xlu0.b32.end [16/16] 0.0, 128
    %v74 = vpop.trf.xlu0
    %v75 = vpop.trf.xlu0
    %v76 = vpop.trf.xlu0
    %v77 = vpop.trf.xlu0
    %v78 = vpop.trf.xlu0
    %v79 = vpop.trf.xlu0
    %v80 = vpop.trf.xlu0
    %v81 = vpop.trf.xlu0
    %v82 = vpop.trf.xlu0
    %v83 = vpop.trf.xlu0
    %v84 = vpop.trf.xlu0
    %v85 = vpop.trf.xlu0
    %v86 = vpop.trf.xlu0
    %v87 = vpop.trf.xlu0
    %v88 = vpop.trf.xlu0
    %v89 = vpop.trf.xlu0
    %s90 = scalar_lea.vmem %s0, 16
    %v91 = vld [vmem:[%s90] sm:$0xff]
    %v92 = vld [vmem:[%s90 + $0x8] sm:$0xff]
    %93 = vxpose.xlu0.b32.start [1/16] %v91, 128
    %94 = vxpose.xlu0.b32.cont [2/16] %v92, 128
    %95 = vxpose.xlu0.b32.cont [3/16] 0.0, 128
    %96 = vxpose.xlu0.b32.cont [4/16] 0.0, 128
    %97 = vxpose.xlu0.b32.cont [5/16] 0.0, 128
    %98 = vxpose.xlu0.b32.cont [6/16] 0.0, 128
    %99 = vxpose.xlu0.b32.cont [7/16] 0.0, 128
    %100 = vxpose.xlu0.b32.cont [8/16] 0.0, 128
    %101 = vxpose.xlu0.b32.cont [9/16] 0.0, 128
    %102 = vxpose.xlu0.b32.cont [10/16] 0.0, 128
    %103 = vxpose.xlu0.b32.cont [11/16] 0.0, 128
    %104 = vxpose.xlu0.b32.cont [12/16] 0.0, 128
    %105 = vxpose.xlu0.b32.cont [13/16] 0.0, 128
    %106 = vxpose.xlu0.b32.cont [14/16] 0.0, 128
    %107 = vxpose.xlu0.b32.cont [15/16] 0.0, 128
    %108 = vxpose.xlu0.b32.end [16/16] 0.0, 128
    %v109 = vpop.trf.xlu0
    %v110 = vpop.trf.xlu0
    %v111 = vpop.trf.xlu0
    %v112 = vpop.trf.xlu0
    %v113 = vpop.trf.xlu0
    %v114 = vpop.trf.xlu0
    %v115 = vpop.trf.xlu0
    %v116 = vpop.trf.xlu0
    %v117 = vpop.trf.xlu0
    %v118 = vpop.trf.xlu0
    %v119 = vpop.trf.xlu0
    %v120 = vpop.trf.xlu0
    %v121 = vpop.trf.xlu0
    %v122 = vpop.trf.xlu0
    %v123 = vpop.trf.xlu0
    %v124 = vpop.trf.xlu0
    %v125 = vperm.slane %v48, 0
    %vm126 = vcmask 130048
    %v128 = vsel %vm126, %v74, 0
    %v131 = vsel %vm126, %v109, 0
    %133 = vmatpush.msra.mxu0 0.0
    %134 = vmatpush.msra.mxu0 0.0
    %135 = vmatpush.msra.mxu0 0.0
    %136 = vmatpush.msra.mxu0 0.0
    %137 = vmatpush.msra.mxu0 0.0
    %138 = vmatpush.msra.mxu0 0.0
    %139 = vmatpush.msra.mxu0 0.0
    %140 = vmatpush.msra.mxu0 0.0
    %141 = vmatpush.msra.mxu0 0.0
    %142 = vmatpush.msra.mxu0 0.0
    %143 = vmatpush.msra.mxu0 0.0
    %144 = vmatpush.msra.mxu0 0.0
    %145 = vmatpush.msra.mxu0 0.0
    %146 = vmatpush.msra.mxu0 0.0
    %147 = vmatpush.msra.mxu0 %v16
    %148 = vmatpush.msra.mxu0 %v15
    %149 = vmatmul.f32.gmra.mxu0 %v128
    %v150 = vpop.f32.mrf.mxu0
    %v151 = vadd.f32 %v125, %v150
    %152 = vmatmul.f32.gmra.mxu0 %v131
    %v153 = vpop.f32.mrf.mxu0
    %v154 = vadd.f32 %v125, %v153
    %155 = vdwg.mxu0
    %v156 = vlaneseq
    %v157 = vshrl.u32 %v156, 7
    %v158 = vadd.s32 %v157, 8
    %vm159 = vcmp.lt.s32.totalorder %v157, 0
    %v160 = vsub.s32 0, %v157
    %v161 = vsel %vm159, %v160, %v157
    %v162 = vshrl.u32 %v161, 3
    %v163 = vand.u32 %v161, 7
    %v164 = vsub.s32 0, %v163
    %v165 = vsel %vm159, %v164, %v163
    %vm166 = vcmp.lt.s32.totalorder %v158, 0
    %v167 = vsub.s32 0, %v158
    %v168 = vsel %vm166, %v167, %v158
    %v169 = vshrl.u32 %v168, 3
    %v170 = vand.u32 %v168, 7
    %v171 = vsub.s32 0, %v170
    %v172 = vsel %vm166, %v171, %v170
    %vm173 = vcmp.ne.s32.totalorder %v165, 0
    %vm174 = vcmp.ne.s32.totalorder %v172, 0
    %vm175 = vcmp.lt.s32.totalorder %v165, 0
    %vm176 = vcmp.lt.s32.totalorder %v172, 0
    %vm177 = vmand %vm175, %vm173
    %vm178 = vmand %vm176, %vm174
    %v179 = vadd.s32 %v165, 8
    %v180 = vadd.s32 %v172, 8
    %v181 = vsel %vm177, %v179, %v165
    %v182 = vsel %vm178, %v180, %v172
    %vm183 = vcmp.eq.s32.totalorder %v181, 0
    %vm184 = vcmp.eq.s32.totalorder %v182, 0
    %v186 = vrot.slane %v154, 7
    %vm189 = vcmask 1040384
    %v190 = vrot.slane %v151, 7
    %v191 = vsel %vm189, %v190, %v186
    %v194 = vsel %vm189, %v186, %v190
    %v195 = vsel %vm183, 1, 0
    %v196 = vsel %vm184, 1, 0
    %vm197 = vcmp.eq.s32.totalorder %v195, 1
    %vm198 = vcmp.eq.s32.totalorder %v196, 1
    %v199 = vsel %vm197, 0.0, %v194
    %v200 = vsel %vm198, 0.0, %v191
    %vm201 = vcmp.eq.s32.totalorder %v181, 7
    %vm202 = vcmp.eq.s32.totalorder %v182, 7
    %vm203 = vcmask 1046528
    %v204 = vrot.slane %v151, 1
    %v205 = vrot.slane %v154, 1
    %v206 = vsel %vm203, %v204, %v205
    %v210 = vsel %vm203, %v205, %v204
    %v211 = vsel %vm201, 1, 0
    %v212 = vsel %vm202, 1, 0
    %vm213 = vcmp.eq.s32.totalorder %v211, 1
    %vm214 = vcmp.eq.s32.totalorder %v212, 1
    %v215 = vsel %vm213, 0.0, %v206
    %v216 = vsel %vm214, 0.0, %v210
    %217 = vrot.lane.b32.xlu0 %v151, 32
    %v218 = vpop.permute.xlu0 %217
    %219 = vrot.lane.b32.xlu0 %v154, 32
    %v220 = vpop.permute.xlu0 %219
    %225 = vrot.lane.b32.xlu0 %v215, 64
    %v226 = vpop.permute.xlu0 %225
    %227 = vrot.lane.b32.xlu0 %v216, 64
    %v228 = vpop.permute.xlu0 %227
    %vm231 = vcmask 261120
    %v232 = vsel %vm231, %v199, %v218
    %v233 = vsel %vm231, %v200, %v220
    %vm234 = vcmask 523264
    %v235 = vsel %vm234, %v232, %v226
    %v236 = vsel %vm234, %v233, %v228
    %v237 = vperm.slane %v49, 0
    %vm238 = vcmask 785408
    %v240 = vsel %vm238, %v235, 0
    %v243 = vsel %vm238, %v236, 0
    %245 = vmatpush.msra.mxu0 0.0
    %246 = vmatpush.msra.mxu0 0.0
    %247 = vmatpush.msra.mxu0 0.0
    %248 = vmatpush.msra.mxu0 0.0
    %249 = vmatpush.msra.mxu0 %v28
    %250 = vmatpush.msra.mxu0 %v27
    %251 = vmatpush.msra.mxu0 %v26
    %252 = vmatpush.msra.mxu0 %v25
    %253 = vmatpush.msra.mxu0 %v24
    %254 = vmatpush.msra.mxu0 %v23
    %255 = vmatpush.msra.mxu0 %v22
    %256 = vmatpush.msra.mxu0 %v21
    %257 = vmatpush.msra.mxu0 %v20
    %258 = vmatpush.msra.mxu0 %v19
    %259 = vmatpush.msra.mxu0 %v18
    %260 = vmatpush.msra.mxu0 %v17
    %261 = vmatmul.f32.gmra.mxu0 %v240
    %v262 = vpop.f32.mrf.mxu0
    %v263 = vadd.f32 %v237, %v262
    %264 = vmatmul.f32.gmra.mxu0 %v243
    %v265 = vpop.f32.mrf.mxu0
    %v266 = vadd.f32 %v237, %v265
    %267 = vdwg.mxu0
    %vm268 = vcmask 392192
    %v269 = vsel %vm268, %v263, 0.0
    %v270 = vsel %vm268, %v266, 0.0
    %v271 = vadd.f32 %v269, %v270
    %v272 = vrot.slane %v271, 4
    %v273 = vadd.f32 %v271, %v272
    %v274 = vrot.slane %v273, 2
    %v275 = vadd.f32 %v273, %v274
    %v276 = vrot.slane %v275, 1
    %v277 = vadd.f32 %v275, %v276
    %279 = vrot.lane.b32.xlu0 %v277, 104
    %v280 = vpop.permute.xlu0 %279
    %v282 = vadd.f32 %v277, %v280
    %v283 = vmul.f32 %v282, 0.03125
    %285 = vrot.lane.b32.xlu0 %v283, 24
    %v286 = vpop.permute.xlu0 %285
    %vm288 = vcmask 195584
    %v289 = vsel %vm288, %v283, %v286
    %v290 = vperm.slane %v289, 0
    %v291 = vsub.f32 %v263, %v290
    %v292 = vsub.f32 %v266, %v290
    %v293 = vmul.f32 %v291, %v291
    %v294 = vmul.f32 %v292, %v292
    %v295 = vsel %vm268, %v293, 0.0
    %v296 = vsel %vm268, %v294, 0.0
    %v297 = vadd.f32 %v295, %v296
    %v298 = vrot.slane %v297, 4
    %v299 = vadd.f32 %v297, %v298
    %v300 = vrot.slane %v299, 2
    %v301 = vadd.f32 %v299, %v300
    %v302 = vrot.slane %v301, 1
    %v303 = vadd.f32 %v301, %v302
    %305 = vrot.lane.b32.xlu0 %v303, 104
    %v306 = vpop.permute.xlu0 %305
    %v308 = vadd.f32 %v303, %v306
    %v309 = vmul.f32 %v308, 0.03125
    %311 = vrot.lane.b32.xlu0 %v309, 24
    %v312 = vpop.permute.xlu0 %311
    %v314 = vsel %vm288, %v309, %v312
    %v315 = vadd.f32 %v314, 1e-05
    %v316 = vrsqrt.pop %v315
    %v317 = vmul.f32 %v316, %v315
    %v318 = vmul.f32 %v317, %v316
    %v319 = vmul.f32 0.5, %v318
    %v320 = vsub.f32 1.5, %v319
    %v321 = vmul.f32 %v316, %v320
    %vm322 = vweird.f32 %v315
    %vm323 = vweird.f32 %v316
    %vm324 = vmor %vm322, %vm323
    %v325 = vsel %vm324, %v316, %v321
    %v326 = vperm.slane %v325, 0
    %v327 = vmul.f32 %v291, %v326
    %v328 = vmul.f32 %v292, %v326
    %v329 = vperm.slane %v50, 0
    %v330 = vmul.f32 %v327, %v329
    %v331 = vmul.f32 %v328, %v329
    %v332 = vperm.slane %v51, 0
    %v333 = vadd.f32 %v330, %v332
    %v334 = vadd.f32 %v331, %v332
    %v336 = vrot.slane %v334, 7
    %v339 = vrot.slane %v333, 7
    %v340 = vsel %vm189, %v339, %v336
    %v343 = vsel %vm189, %v336, %v339
    %v344 = vsel %vm197, 0.0, %v343
    %v345 = vsel %vm198, 0.0, %v340
    %v346 = vrot.slane %v333, 1
    %v347 = vrot.slane %v334, 1
    %v348 = vsel %vm203, %v346, %v347
    %v352 = vsel %vm203, %v347, %v346
    %v353 = vsel %vm213, 0.0, %v348
    %v354 = vsel %vm214, 0.0, %v352
    %355 = vrot.lane.b32.xlu0 %v333, 48
    %v356 = vpop.permute.xlu0 %355
    %357 = vrot.lane.b32.xlu0 %v334, 48
    %v358 = vpop.permute.xlu0 %357
    %363 = vrot.lane.b32.xlu0 %v353, 96
    %v364 = vpop.permute.xlu0 %363
    %365 = vrot.lane.b32.xlu0 %v354, 96
    %v366 = vpop.permute.xlu0 %365
    %v369 = vsel %vm268, %v344, %v356
    %v370 = vsel %vm268, %v345, %v358
    %v371 = vsel %vm238, %v369, %v364
    %v372 = vsel %vm238, %v370, %v366
    %v373 = vperm.slane %v52, 0
    %v374 = vsel %vm126, %v364, 0
    %v376 = vsel %vm126, %v366, 0
    %378 = vmatpush.msra.mxu0 %v44
    %379 = vmatpush.msra.mxu0 %v43
    %380 = vmatpush.msra.mxu0 %v42
    %381 = vmatpush.msra.mxu0 %v41
    %382 = vmatpush.msra.mxu0 %v40
    %383 = vmatpush.msra.mxu0 %v39
    %384 = vmatpush.msra.mxu0 %v38
    %385 = vmatpush.msra.mxu0 %v37
    %386 = vmatpush.msra.mxu0 %v36
    %387 = vmatpush.msra.mxu0 %v35
    %388 = vmatpush.msra.mxu0 %v34
    %389 = vmatpush.msra.mxu0 %v33
    %390 = vmatpush.msra.mxu0 %v32
    %391 = vmatpush.msra.mxu0 %v31
    %392 = vmatpush.msra.mxu0 %v30
    %393 = vmatpush.msra.mxu0 %v29
    %394 = vmatmul.f32.gmra.mxu0 %v371
    %v395 = vpop.f32.mrf.mxu0
    %v396 = vadd.f32 %v373, %v395
    %397 = vmatmul.f32.gmra.mxu0 %v372
    %v398 = vpop.f32.mrf.mxu0
    %v399 = vadd.f32 %v373, %v398
    %400 = vdwg.mxu0
    %401 = vmatpush.msra.mxu0 0.0
    %402 = vmatpush.msra.mxu0 0.0
    %403 = vmatpush.msra.mxu0 0.0
    %404 = vmatpush.msra.mxu0 0.0
    %405 = vmatpush.msra.mxu0 0.0
    %406 = vmatpush.msra.mxu0 0.0
    %407 = vmatpush.msra.mxu0 0.0
    %408 = vmatpush.msra.mxu0 0.0
    %409 = vmatpush.msra.mxu0 0.0
    %410 = vmatpush.msra.mxu0 0.0
    %411 = vmatpush.msra.mxu0 0.0
    %412 = vmatpush.msra.mxu0 0.0
    %413 = vmatpush.msra.mxu0 0.0
    %414 = vmatpush.msra.mxu0 0.0
    %415 = vmatpush.msra.mxu0 %v46
    %416 = vmatpush.msra.mxu0 %v45
    %417 = vmatmul.f32.gmra.mxu0 %v374
    %v418 = vpop.f32.mrf.mxu0
    %v419 = vadd.f32 %v396, %v418
    %420 = vmatmul.f32.gmra.mxu0 %v376
    %v421 = vpop.f32.mrf.mxu0
    %v422 = vadd.f32 %v399, %v421
    %423 = vdwg.mxu0
    %v424 = vsel %vm234, %v419, 0.0
    %v425 = vsel %vm234, %v422, 0.0
    %v426 = vadd.f32 %v424, %v425
    %v427 = vrot.slane %v426, 4
    %v428 = vadd.f32 %v426, %v427
    %v429 = vrot.slane %v428, 2
    %v430 = vadd.f32 %v428, %v429
    %v431 = vrot.slane %v430, 1
    %v432 = vadd.f32 %v430, %v431
    %434 = vrot.lane.b32.xlu0 %v432, 112
    %v435 = vpop.permute.xlu0 %434
    %v437 = vadd.f32 %v432, %v435
    %438 = vrot.lane.b32.xlu0 %v432, 96
    %v439 = vpop.permute.xlu0 %438
    %v441 = vadd.f32 %v437, %v439
    %442 = vrot.lane.b32.xlu0 %v432, 80
    %v443 = vpop.permute.xlu0 %442
    %v445 = vadd.f32 %v441, %v443
    %v446 = vmul.f32 %v445, 0.015625
    %448 = vrot.lane.b32.xlu0 %v446, 16
    %v449 = vpop.permute.xlu0 %448
    %451 = vrot.lane.b32.xlu0 %v446, 32
    %v452 = vpop.permute.xlu0 %451
    %454 = vrot.lane.b32.xlu0 %v446, 48
    %v455 = vpop.permute.xlu0 %454
    %v457 = vsel %vm126, %v446, %v449
    %v458 = vsel %vm231, %v457, %v452
    %v459 = vsel %vm268, %v458, %v455
    %v460 = vperm.slane %v459, 0
    %v461 = vsub.f32 %v419, %v460
    %v462 = vsub.f32 %v422, %v460
    %v463 = vmul.f32 %v461, %v461
    %v464 = vmul.f32 %v462, %v462
    %v465 = vsel %vm234, %v463, 0.0
    %v466 = vsel %vm234, %v464, 0.0
    %v467 = vadd.f32 %v465, %v466
    %v468 = vrot.slane %v467, 4
    %v469 = vadd.f32 %v467, %v468
    %v470 = vrot.slane %v469, 2
    %v471 = vadd.f32 %v469, %v470
    %v472 = vrot.slane %v471, 1
    %v473 = vadd.f32 %v471, %v472
    %475 = vrot.lane.b32.xlu0 %v473, 112
    %v476 = vpop.permute.xlu0 %475
    %v478 = vadd.f32 %v473, %v476
    %479 = vrot.lane.b32.xlu0 %v473, 96
    %v480 = vpop.permute.xlu0 %479
    %v482 = vadd.f32 %v478, %v480
    %483 = vrot.lane.b32.xlu0 %v473, 80
    %v484 = vpop.permute.xlu0 %483
    %v486 = vadd.f32 %v482, %v484
    %v487 = vmul.f32 %v486, 0.015625
    %489 = vrot.lane.b32.xlu0 %v487, 16
    %v490 = vpop.permute.xlu0 %489
    %492 = vrot.lane.b32.xlu0 %v487, 32
    %v493 = vpop.permute.xlu0 %492
    %495 = vrot.lane.b32.xlu0 %v487, 48
    %v496 = vpop.permute.xlu0 %495
    %v498 = vsel %vm126, %v487, %v490
    %v499 = vsel %vm231, %v498, %v493
    %v500 = vsel %vm268, %v499, %v496
    %v501 = vadd.f32 %v500, 1e-05
    %v502 = vrsqrt.pop %v501
    %v503 = vmul.f32 %v502, %v501
    %v504 = vmul.f32 %v503, %v502
    %v505 = vmul.f32 0.5, %v504
    %v506 = vsub.f32 1.5, %v505
    %v507 = vmul.f32 %v502, %v506
    %vm508 = vweird.f32 %v501
    %vm509 = vweird.f32 %v502
    %vm510 = vmor %vm508, %vm509
    %v511 = vsel %vm510, %v502, %v507
    %v512 = vperm.slane %v511, 0
    %v513 = vmul.f32 %v461, %v512
    %v514 = vmul.f32 %v462, %v512
    %v515 = vperm.slane %v53, 0
    %v516 = vmul.f32 %v513, %v515
    %v517 = vmul.f32 %v514, %v515
    %v518 = vperm.slane %v54, 0
    %v519 = vadd.f32 %v516, %v518
    %v520 = vadd.f32 %v517, %v518
    %v523 = vrot.slane %v519, 1
    %v524 = vrot.slane %v519, 2
    %v525 = vrot.slane %v519, 3
    %v526 = vrot.slane %v519, 4
    %v527 = vrot.slane %v519, 5
    %v528 = vrot.slane %v519, 6
    %v529 = vrot.slane %v519, 7
    %v530 = vrot.slane %v520, 1
    %v531 = vrot.slane %v520, 2
    %v532 = vrot.slane %v520, 3
    %v533 = vrot.slane %v520, 4
    %v534 = vrot.slane %v520, 5
    %v535 = vrot.slane %v520, 6
    %v536 = vrot.slane %v520, 7
    %v537 = vperm.slane %v519, 0
    %v538 = vperm.slane %v523, 0
    %v539 = vperm.slane %v524, 0
    %v540 = vperm.slane %v525, 0
    %v541 = vperm.slane %v526, 0
    %v542 = vperm.slane %v527, 0
    %v543 = vperm.slane %v528, 0
    %v544 = vperm.slane %v529, 0
    %v545 = vperm.slane %v520, 0
    %v546 = vperm.slane %v530, 0
    %v547 = vperm.slane %v531, 0
    %v548 = vperm.slane %v532, 0
    %v549 = vperm.slane %v533, 0
    %v550 = vperm.slane %v534, 0
    %v551 = vperm.slane %v535, 0
    %v552 = vperm.slane %v536, 0
    %v553 = vadd.s32 %v157, 16
    %v554 = vadd.s32 %v157, 24
    %v555 = vadd.s32 %v157, 32
    %v556 = vadd.s32 %v157, 40
    %v557 = vadd.s32 %v157, 48
    %v558 = vadd.s32 %v157, 56
    %vm559 = vcmp.lt.s32.totalorder %v157, 0
    %v560 = vsub.s32 0, %v157
    %v561 = vsel %vm559, %v560, %v157
    %v562 = vshrl.u32 %v561, 2
    %v563 = vand.u32 %v561, 3
    %v564 = vsub.s32 0, %v563
    %v565 = vsel %vm559, %v564, %v563
    %vm566 = vcmp.lt.s32.totalorder %v158, 0
    %v567 = vsub.s32 0, %v158
    %v568 = vsel %vm566, %v567, %v158
    %v569 = vshrl.u32 %v568, 2
    %v570 = vand.u32 %v568, 3
    %v571 = vsub.s32 0, %v570
    %v572 = vsel %vm566, %v571, %v570
    %vm573 = vcmp.lt.s32.totalorder %v553, 0
    %v574 = vsub.s32 0, %v553
    %v575 = vsel %vm573, %v574, %v553
    %v576 = vshrl.u32 %v575, 2
    %v577 = vand.u32 %v575, 3
    %v578 = vsub.s32 0, %v577
    %v579 = vsel %vm573, %v578, %v577
    %vm580 = vcmp.lt.s32.totalorder %v554, 0
    %v581 = vsub.s32 0, %v554
    %v582 = vsel %vm580, %v581, %v554
    %v583 = vshrl.u32 %v582, 2
    %v584 = vand.u32 %v582, 3
    %v585 = vsub.s32 0, %v584
    %v586 = vsel %vm580, %v585, %v584
    %vm587 = vcmp.lt.s32.totalorder %v555, 0
    %v588 = vsub.s32 0, %v555
    %v589 = vsel %vm587, %v588, %v555
    %v590 = vshrl.u32 %v589, 2
    %v591 = vand.u32 %v589, 3
    %v592 = vsub.s32 0, %v591
    %v593 = vsel %vm587, %v592, %v591
    %vm594 = vcmp.lt.s32.totalorder %v556, 0
    %v595 = vsub.s32 0, %v556
    %v596 = vsel %vm594, %v595, %v556
    %v597 = vshrl.u32 %v596, 2
    %v598 = vand.u32 %v596, 3
    %v599 = vsub.s32 0, %v598
    %v600 = vsel %vm594, %v599, %v598
    %vm601 = vcmp.lt.s32.totalorder %v557, 0
    %v602 = vsub.s32 0, %v557
    %v603 = vsel %vm601, %v602, %v557
    %v604 = vshrl.u32 %v603, 2
    %v605 = vand.u32 %v603, 3
    %v606 = vsub.s32 0, %v605
    %v607 = vsel %vm601, %v606, %v605
    %vm608 = vcmp.lt.s32.totalorder %v558, 0
    %v609 = vsub.s32 0, %v558
    %v610 = vsel %vm608, %v609, %v558
    %v611 = vshrl.u32 %v610, 2
    %v612 = vand.u32 %v610, 3
    %v613 = vsub.s32 0, %v612
    %v614 = vsel %vm608, %v613, %v612
    %vm615 = vcmp.ne.s32.totalorder %v565, 0
    %vm616 = vcmp.ne.s32.totalorder %v572, 0
    %vm617 = vcmp.ne.s32.totalorder %v579, 0
    %vm618 = vcmp.ne.s32.totalorder %v586, 0
    %vm619 = vcmp.ne.s32.totalorder %v593, 0
    %vm620 = vcmp.ne.s32.totalorder %v600, 0
    %vm621 = vcmp.ne.s32.totalorder %v607, 0
    %vm622 = vcmp.ne.s32.totalorder %v614, 0
    %vm623 = vcmp.lt.s32.totalorder %v565, 0
    %vm624 = vcmp.lt.s32.totalorder %v572, 0
    %vm625 = vcmp.lt.s32.totalorder %v579, 0
    %vm626 = vcmp.lt.s32.totalorder %v586, 0
    %vm627 = vcmp.lt.s32.totalorder %v593, 0
    %vm628 = vcmp.lt.s32.totalorder %v600, 0
    %vm629 = vcmp.lt.s32.totalorder %v607, 0
    %vm630 = vcmp.lt.s32.totalorder %v614, 0
    %vm631 = vmand %vm623, %vm615
    %vm632 = vmand %vm624, %vm616
    %vm633 = vmand %vm625, %vm617
    %vm634 = vmand %vm626, %vm618
    %vm635 = vmand %vm627, %vm619
    %vm636 = vmand %vm628, %vm620
    %vm637 = vmand %vm629, %vm621
    %vm638 = vmand %vm630, %vm622
    %v639 = vadd.s32 %v565, 4
    %v640 = vadd.s32 %v572, 4
    %v641 = vadd.s32 %v579, 4
    %v642 = vadd.s32 %v586, 4
    %v643 = vadd.s32 %v593, 4
    %v644 = vadd.s32 %v600, 4
    %v645 = vadd.s32 %v607, 4
    %v646 = vadd.s32 %v614, 4
    %v647 = vsel %vm631, %v639, %v565
    %v648 = vsel %vm632, %v640, %v572
    %v649 = vsel %vm633, %v641, %v579
    %v650 = vsel %vm634, %v642, %v586
    %v651 = vsel %vm635, %v643, %v593
    %v652 = vsel %vm636, %v644, %v600
    %v653 = vsel %vm637, %v645, %v607
    %v654 = vsel %vm638, %v646, %v614
    %vm655 = vcmp.eq.s32.totalorder %v647, 0
    %vm656 = vcmp.eq.s32.totalorder %v648, 0
    %vm657 = vcmp.eq.s32.totalorder %v649, 0
    %vm658 = vcmp.eq.s32.totalorder %v650, 0
    %vm659 = vcmp.eq.s32.totalorder %v651, 0
    %vm660 = vcmp.eq.s32.totalorder %v652, 0
    %vm661 = vcmp.eq.s32.totalorder %v653, 0
    %vm662 = vcmp.eq.s32.totalorder %v654, 0
    %vm663 = vcmp.eq.s32.totalorder %v647, 1
    %vm664 = vcmp.eq.s32.totalorder %v648, 1
    %vm665 = vcmp.eq.s32.totalorder %v649, 1
    %vm666 = vcmp.eq.s32.totalorder %v650, 1
    %vm667 = vcmp.eq.s32.totalorder %v651, 1
    %vm668 = vcmp.eq.s32.totalorder %v652, 1
    %vm669 = vcmp.eq.s32.totalorder %v653, 1
    %vm670 = vcmp.eq.s32.totalorder %v654, 1
    %vm671 = vcmp.eq.s32.totalorder %v647, 2
    %vm672 = vcmp.eq.s32.totalorder %v648, 2
    %vm673 = vcmp.eq.s32.totalorder %v649, 2
    %vm674 = vcmp.eq.s32.totalorder %v650, 2
    %vm675 = vcmp.eq.s32.totalorder %v651, 2
    %vm676 = vcmp.eq.s32.totalorder %v652, 2
    %vm677 = vcmp.eq.s32.totalorder %v653, 2
    %vm678 = vcmp.eq.s32.totalorder %v654, 2
    %v679 = vsel %vm671, 1, 0
    %v680 = vsel %vm672, 1, 0
    %v681 = vsel %vm673, 1, 0
    %v682 = vsel %vm674, 1, 0
    %v683 = vsel %vm675, 1, 0
    %v684 = vsel %vm676, 1, 0
    %v685 = vsel %vm677, 1, 0
    %v686 = vsel %vm678, 1, 0
    %vm687 = vcmp.eq.s32.totalorder %v679, 1
    %vm688 = vcmp.eq.s32.totalorder %v680, 1
    %vm689 = vcmp.eq.s32.totalorder %v681, 1
    %vm690 = vcmp.eq.s32.totalorder %v682, 1
    %vm691 = vcmp.eq.s32.totalorder %v683, 1
    %vm692 = vcmp.eq.s32.totalorder %v684, 1
    %vm693 = vcmp.eq.s32.totalorder %v685, 1
    %vm694 = vcmp.eq.s32.totalorder %v686, 1
    %695 = vst [vmem:[#allocation1] ss:$2 sm:$0xff] %v537
    %s696 = scalar_lea.vmem [#allocation1], 1
    %697 = vst [vmem:[%s696] ss:$2 sm:$0xff] %v538
    %s698 = scalar_lea.vmem [#allocation1], 16
    %699 = vst [vmem:[%s698] ss:$2 sm:$0xff] %v539
    %s700 = scalar_lea.vmem [#allocation1], 17
    %701 = vst [vmem:[%s700] ss:$2 sm:$0xff] %v540
    %s702 = scalar_lea.vmem [#allocation1], 32
    %703 = vst [vmem:[%s702] ss:$2 sm:$0xff] %v541
    %s704 = scalar_lea.vmem [#allocation1], 33
    %705 = vst [vmem:[%s704] ss:$2 sm:$0xff] %v542
    %s706 = scalar_lea.vmem [#allocation1], 48
    %707 = vst [vmem:[%s706] ss:$2 sm:$0xff] %v543
    %s708 = scalar_lea.vmem [#allocation1], 49
    %709 = vst [vmem:[%s708] ss:$2 sm:$0xff] %v544
    %v710 = vld.sshfl [vmem:[#allocation1] sm:$0xff pattern:$0x75316420]
    %v711 = vld.sshfl [vmem:[#allocation1 + $0x10] sm:$0xff pattern:$0x75316420]
    %v712 = vld.sshfl [vmem:[#allocation1 + $0x20] sm:$0xff pattern:$0x75316420]
    %v713 = vld.sshfl [vmem:[#allocation1 + $0x30] sm:$0xff pattern:$0x75316420]
    %714 = vst [vmem:[#allocation1] ss:$2 sm:$0xff] %v545
    %715 = vst [vmem:[%s696] ss:$2 sm:$0xff] %v546
    %716 = vst [vmem:[%s698] ss:$2 sm:$0xff] %v547
    %717 = vst [vmem:[%s700] ss:$2 sm:$0xff] %v548
    %718 = vst [vmem:[%s702] ss:$2 sm:$0xff] %v549
    %719 = vst [vmem:[%s704] ss:$2 sm:$0xff] %v550
    %720 = vst [vmem:[%s706] ss:$2 sm:$0xff] %v551
    %721 = vst [vmem:[%s708] ss:$2 sm:$0xff] %v552
    %v722 = vld.sshfl [vmem:[#allocation1] sm:$0xff pattern:$0x75316420]
    %v723 = vld.sshfl [vmem:[#allocation1 + $0x10] sm:$0xff pattern:$0x75316420]
    %v724 = vld.sshfl [vmem:[#allocation1 + $0x20] sm:$0xff pattern:$0x75316420]
    %v725 = vld.sshfl [vmem:[#allocation1 + $0x30] sm:$0xff pattern:$0x75316420]
    %726 = vrot.lane.b32.xlu0 %v710, 96
    %v727 = vpop.permute.xlu0 %726
    %728 = vrot.lane.b32.xlu0 %v711, 96
    %v729 = vpop.permute.xlu0 %728
    %730 = vrot.lane.b32.xlu0 %v712, 96
    %v731 = vpop.permute.xlu0 %730
    %732 = vrot.lane.b32.xlu0 %v713, 96
    %v733 = vpop.permute.xlu0 %732
    %734 = vrot.lane.b32.xlu0 %v722, 96
    %v735 = vpop.permute.xlu0 %734
    %736 = vrot.lane.b32.xlu0 %v723, 96
    %v737 = vpop.permute.xlu0 %736
    %738 = vrot.lane.b32.xlu0 %v724, 96
    %v739 = vpop.permute.xlu0 %738
    %740 = vrot.lane.b32.xlu0 %v725, 96
    %v741 = vpop.permute.xlu0 %740
    %750 = vst [vmem:[#allocation1] ss:$2 sm:$0xff] %v537
    %s751 = scalar_lea.vmem [#allocation1], 1
    %752 = vst [vmem:[%s751] ss:$2 sm:$0xff] %v538
    %s753 = scalar_lea.vmem [#allocation1], 16
    %754 = vst [vmem:[%s753] ss:$2 sm:$0xff] %v539
    %s755 = scalar_lea.vmem [#allocation1], 17
    %756 = vst [vmem:[%s755] ss:$2 sm:$0xff] %v540
    %s757 = scalar_lea.vmem [#allocation1], 32
    %758 = vst [vmem:[%s757] ss:$2 sm:$0xff] %v541
    %s759 = scalar_lea.vmem [#allocation1], 33
    %760 = vst [vmem:[%s759] ss:$2 sm:$0xff] %v542
    %s761 = scalar_lea.vmem [#allocation1], 48
    %762 = vst [vmem:[%s761] ss:$2 sm:$0xff] %v543
    %s763 = scalar_lea.vmem [#allocation1], 49
    %764 = vst [vmem:[%s763] ss:$2 sm:$0xff] %v544
    %v765 = vld.sshfl [vmem:[#allocation1] sm:$0xff pattern:$0x75316420]
    %v766 = vld.sshfl [vmem:[#allocation1 + $0x10] sm:$0xff pattern:$0x75316420]
    %v767 = vld.sshfl [vmem:[#allocation1 + $0x20] sm:$0xff pattern:$0x75316420]
    %v768 = vld.sshfl [vmem:[#allocation1 + $0x30] sm:$0xff pattern:$0x75316420]
    %769 = vst [vmem:[#allocation1] ss:$2 sm:$0xff] %v545
    %770 = vst [vmem:[%s751] ss:$2 sm:$0xff] %v546
    %771 = vst [vmem:[%s753] ss:$2 sm:$0xff] %v547
    %772 = vst [vmem:[%s755] ss:$2 sm:$0xff] %v548
    %773 = vst [vmem:[%s757] ss:$2 sm:$0xff] %v549
    %774 = vst [vmem:[%s759] ss:$2 sm:$0xff] %v550
    %775 = vst [vmem:[%s761] ss:$2 sm:$0xff] %v551
    %776 = vst [vmem:[%s763] ss:$2 sm:$0xff] %v552
    %v777 = vld.sshfl [vmem:[#allocation1] sm:$0xff pattern:$0x75316420]
    %v778 = vld.sshfl [vmem:[#allocation1 + $0x10] sm:$0xff pattern:$0x75316420]
    %v779 = vld.sshfl [vmem:[#allocation1 + $0x20] sm:$0xff pattern:$0x75316420]
    %v780 = vld.sshfl [vmem:[#allocation1 + $0x30] sm:$0xff pattern:$0x75316420]
    %781 = vrot.lane.b32.xlu0 %v765, 80
    %v782 = vpop.permute.xlu0 %781
    %783 = vrot.lane.b32.xlu0 %v766, 80
    %v784 = vpop.permute.xlu0 %783
    %785 = vrot.lane.b32.xlu0 %v767, 80
    %v786 = vpop.permute.xlu0 %785
    %787 = vrot.lane.b32.xlu0 %v768, 80
    %v788 = vpop.permute.xlu0 %787
    %789 = vrot.lane.b32.xlu0 %v777, 80
    %v790 = vpop.permute.xlu0 %789
    %791 = vrot.lane.b32.xlu0 %v778, 80
    %v792 = vpop.permute.xlu0 %791
    %793 = vrot.lane.b32.xlu0 %v779, 80
    %v794 = vpop.permute.xlu0 %793
    %795 = vrot.lane.b32.xlu0 %v780, 80
    %v796 = vpop.permute.xlu0 %795
    %v805 = vsel %vm687, %v727, %v782
    %v806 = vsel %vm688, %v729, %v784
    %v807 = vsel %vm689, %v731, %v786
    %v808 = vsel %vm690, %v733, %v788
    %v809 = vsel %vm691, %v735, %v790
    %v810 = vsel %vm692, %v737, %v792
    %v811 = vsel %vm693, %v739, %v794
    %v812 = vsel %vm694, %v741, %v796
    %v813 = vsel %vm663, 1, 0
    %v814 = vsel %vm664, 1, 0
    %v815 = vsel %vm665, 1, 0
    %v816 = vsel %vm666, 1, 0
    %v817 = vsel %vm667, 1, 0
    %v818 = vsel %vm668, 1, 0
    %v819 = vsel %vm669, 1, 0
    %v820 = vsel %vm670, 1, 0
    %vm821 = vcmp.eq.s32.totalorder %v813, 1
    %vm822 = vcmp.eq.s32.totalorder %v814, 1
    %vm823 = vcmp.eq.s32.totalorder %v815, 1
    %vm824 = vcmp.eq.s32.totalorder %v816, 1
    %vm825 = vcmp.eq.s32.totalorder %v817, 1
    %vm826 = vcmp.eq.s32.totalorder %v818, 1
    %vm827 = vcmp.eq.s32.totalorder %v819, 1
    %vm828 = vcmp.eq.s32.totalorder %v820, 1
    %829 = vst [vmem:[#allocation1] ss:$2 sm:$0xff] %v537
    %s830 = scalar_lea.vmem [#allocation1], 1
    %831 = vst [vmem:[%s830] ss:$2 sm:$0xff] %v538
    %s832 = scalar_lea.vmem [#allocation1], 16
    %833 = vst [vmem:[%s832] ss:$2 sm:$0xff] %v539
    %s834 = scalar_lea.vmem [#allocation1], 17
    %835 = vst [vmem:[%s834] ss:$2 sm:$0xff] %v540
    %s836 = scalar_lea.vmem [#allocation1], 32
    %837 = vst [vmem:[%s836] ss:$2 sm:$0xff] %v541
    %s838 = scalar_lea.vmem [#allocation1], 33
    %839 = vst [vmem:[%s838] ss:$2 sm:$0xff] %v542
    %s840 = scalar_lea.vmem [#allocation1], 48
    %841 = vst [vmem:[%s840] ss:$2 sm:$0xff] %v543
    %s842 = scalar_lea.vmem [#allocation1], 49
    %843 = vst [vmem:[%s842] ss:$2 sm:$0xff] %v544
    %v844 = vld.sshfl [vmem:[#allocation1] sm:$0xff pattern:$0x75316420]
    %v845 = vld.sshfl [vmem:[#allocation1 + $0x10] sm:$0xff pattern:$0x75316420]
    %v846 = vld.sshfl [vmem:[#allocation1 + $0x20] sm:$0xff pattern:$0x75316420]
    %v847 = vld.sshfl [vmem:[#allocation1 + $0x30] sm:$0xff pattern:$0x75316420]
    %848 = vst [vmem:[#allocation1] ss:$2 sm:$0xff] %v545
    %849 = vst [vmem:[%s830] ss:$2 sm:$0xff] %v546
    %850 = vst [vmem:[%s832] ss:$2 sm:$0xff] %v547
    %851 = vst [vmem:[%s834] ss:$2 sm:$0xff] %v548
    %852 = vst [vmem:[%s836] ss:$2 sm:$0xff] %v549
    %853 = vst [vmem:[%s838] ss:$2 sm:$0xff] %v550
    %854 = vst [vmem:[%s840] ss:$2 sm:$0xff] %v551
    %855 = vst [vmem:[%s842] ss:$2 sm:$0xff] %v552
    %v856 = vld.sshfl [vmem:[#allocation1] sm:$0xff pattern:$0x75316420]
    %v857 = vld.sshfl [vmem:[#allocation1 + $0x10] sm:$0xff pattern:$0x75316420]
    %v858 = vld.sshfl [vmem:[#allocation1 + $0x20] sm:$0xff pattern:$0x75316420]
    %v859 = vld.sshfl [vmem:[#allocation1 + $0x30] sm:$0xff pattern:$0x75316420]
    %860 = vrot.lane.b32.xlu0 %v844, 112
    %v861 = vpop.permute.xlu0 %860
    %862 = vrot.lane.b32.xlu0 %v845, 112
    %v863 = vpop.permute.xlu0 %862
    %864 = vrot.lane.b32.xlu0 %v846, 112
    %v865 = vpop.permute.xlu0 %864
    %866 = vrot.lane.b32.xlu0 %v847, 112
    %v867 = vpop.permute.xlu0 %866
    %868 = vrot.lane.b32.xlu0 %v856, 112
    %v869 = vpop.permute.xlu0 %868
    %870 = vrot.lane.b32.xlu0 %v857, 112
    %v871 = vpop.permute.xlu0 %870
    %872 = vrot.lane.b32.xlu0 %v858, 112
    %v873 = vpop.permute.xlu0 %872
    %874 = vrot.lane.b32.xlu0 %v859, 112
    %v875 = vpop.permute.xlu0 %874
    %v884 = vsel %vm821, %v861, %v805
    %v885 = vsel %vm822, %v863, %v806
    %v886 = vsel %vm823, %v865, %v807
    %v887 = vsel %vm824, %v867, %v808
    %v888 = vsel %vm825, %v869, %v809
    %v889 = vsel %vm826, %v871, %v810
    %v890 = vsel %vm827, %v873, %v811
    %v891 = vsel %vm828, %v875, %v812
    %v892 = vsel %vm655, 1, 0
    %v893 = vsel %vm656, 1, 0
    %v894 = vsel %vm657, 1, 0
    %v895 = vsel %vm658, 1, 0
    %v896 = vsel %vm659, 1, 0
    %v897 = vsel %vm660, 1, 0
    %v898 = vsel %vm661, 1, 0
    %v899 = vsel %vm662, 1, 0
    %vm900 = vcmp.eq.s32.totalorder %v892, 1
    %vm901 = vcmp.eq.s32.totalorder %v893, 1
    %vm902 = vcmp.eq.s32.totalorder %v894, 1
    %vm903 = vcmp.eq.s32.totalorder %v895, 1
    %vm904 = vcmp.eq.s32.totalorder %v896, 1
    %vm905 = vcmp.eq.s32.totalorder %v897, 1
    %vm906 = vcmp.eq.s32.totalorder %v898, 1
    %vm907 = vcmp.eq.s32.totalorder %v899, 1
    %908 = vst [vmem:[#allocation1] ss:$2 sm:$0xff] %v537
    %s909 = scalar_lea.vmem [#allocation1], 1
    %910 = vst [vmem:[%s909] ss:$2 sm:$0xff] %v538
    %s911 = scalar_lea.vmem [#allocation1], 16
    %912 = vst [vmem:[%s911] ss:$2 sm:$0xff] %v539
    %s913 = scalar_lea.vmem [#allocation1], 17
    %914 = vst [vmem:[%s913] ss:$2 sm:$0xff] %v540
    %s915 = scalar_lea.vmem [#allocation1], 32
    %916 = vst [vmem:[%s915] ss:$2 sm:$0xff] %v541
    %s917 = scalar_lea.vmem [#allocation1], 33
    %918 = vst [vmem:[%s917] ss:$2 sm:$0xff] %v542
    %s919 = scalar_lea.vmem [#allocation1], 48
    %920 = vst [vmem:[%s919] ss:$2 sm:$0xff] %v543
    %s921 = scalar_lea.vmem [#allocation1], 49
    %922 = vst [vmem:[%s921] ss:$2 sm:$0xff] %v544
    %v923 = vld.sshfl [vmem:[#allocation1] sm:$0xff pattern:$0x75316420]
    %v924 = vld.sshfl [vmem:[#allocation1 + $0x10] sm:$0xff pattern:$0x75316420]
    %v925 = vld.sshfl [vmem:[#allocation1 + $0x20] sm:$0xff pattern:$0x75316420]
    %v926 = vld.sshfl [vmem:[#allocation1 + $0x30] sm:$0xff pattern:$0x75316420]
    %927 = vst [vmem:[#allocation1] ss:$2 sm:$0xff] %v545
    %928 = vst [vmem:[%s909] ss:$2 sm:$0xff] %v546
    %929 = vst [vmem:[%s911] ss:$2 sm:$0xff] %v547
    %930 = vst [vmem:[%s913] ss:$2 sm:$0xff] %v548
    %931 = vst [vmem:[%s915] ss:$2 sm:$0xff] %v549
    %932 = vst [vmem:[%s917] ss:$2 sm:$0xff] %v550
    %933 = vst [vmem:[%s919] ss:$2 sm:$0xff] %v551
    %934 = vst [vmem:[%s921] ss:$2 sm:$0xff] %v552
    %v935 = vld.sshfl [vmem:[#allocation1] sm:$0xff pattern:$0x75316420]
    %v936 = vld.sshfl [vmem:[#allocation1 + $0x10] sm:$0xff pattern:$0x75316420]
    %v937 = vld.sshfl [vmem:[#allocation1 + $0x20] sm:$0xff pattern:$0x75316420]
    %v938 = vld.sshfl [vmem:[#allocation1 + $0x30] sm:$0xff pattern:$0x75316420]
    %v947 = vsel %vm900, %v923, %v884
    %v948 = vsel %vm901, %v924, %v885
    %v949 = vsel %vm902, %v925, %v886
    %v950 = vsel %vm903, %v926, %v887
    %v951 = vsel %vm904, %v935, %v888
    %v952 = vsel %vm905, %v936, %v889
    %v953 = vsel %vm906, %v937, %v890
    %v954 = vsel %vm907, %v938, %v891
    %vm955 = vcmp.lt.s32.totalorder %v157, 0
    %v956 = vsub.s32 0, %v157
    %v957 = vsel %vm955, %v956, %v157
    %v958 = vshrl.u32 %v957, 5
    %v959 = vand.u32 %v957, 31
    %v960 = vsub.s32 0, %v959
    %v961 = vsel %vm955, %v960, %v959
    %vm962 = vcmp.lt.s32.totalorder %v158, 0
    %v963 = vsub.s32 0, %v158
    %v964 = vsel %vm962, %v963, %v158
    %v965 = vshrl.u32 %v964, 5
    %v966 = vand.u32 %v964, 31
    %v967 = vsub.s32 0, %v966
    %v968 = vsel %vm962, %v967, %v966
    %vm969 = vcmp.lt.s32.totalorder %v553, 0
    %v970 = vsub.s32 0, %v553
    %v971 = vsel %vm969, %v970, %v553
    %v972 = vshrl.u32 %v971, 5
    %v973 = vand.u32 %v971, 31
    %v974 = vsub.s32 0, %v973
    %v975 = vsel %vm969, %v974, %v973
    %vm976 = vcmp.lt.s32.totalorder %v554, 0
    %v977 = vsub.s32 0, %v554
    %v978 = vsel %vm976, %v977, %v554
    %v979 = vshrl.u32 %v978, 5
    %v980 = vand.u32 %v978, 31
    %v981 = vsub.s32 0, %v980
    %v982 = vsel %vm976, %v981, %v980
    %vm983 = vcmp.lt.s32.totalorder %v555, 0
    %v984 = vsub.s32 0, %v555
    %v985 = vsel %vm983, %v984, %v555
    %v986 = vshrl.u32 %v985, 5
    %v987 = vand.u32 %v985, 31
    %v988 = vsub.s32 0, %v987
    %v989 = vsel %vm983, %v988, %v987
    %vm990 = vcmp.lt.s32.totalorder %v556, 0
    %v991 = vsub.s32 0, %v556
    %v992 = vsel %vm990, %v991, %v556
    %v993 = vshrl.u32 %v992, 5
    %v994 = vand.u32 %v992, 31
    %v995 = vsub.s32 0, %v994
    %v996 = vsel %vm990, %v995, %v994
    %vm997 = vcmp.lt.s32.totalorder %v557, 0
    %v998 = vsub.s32 0, %v557
    %v999 = vsel %vm997, %v998, %v557
    %v1000 = vshrl.u32 %v999, 5
    %v1001 = vand.u32 %v999, 31
    %v1002 = vsub.s32 0, %v1001
    %v1003 = vsel %vm997, %v1002, %v1001
    %vm1004 = vcmp.lt.s32.totalorder %v558, 0
    %v1005 = vsub.s32 0, %v558
    %v1006 = vsel %vm1004, %v1005, %v558
    %v1007 = vshrl.u32 %v1006, 5
    %v1008 = vand.u32 %v1006, 31
    %v1009 = vsub.s32 0, %v1008
    %v1010 = vsel %vm1004, %v1009, %v1008
    %vm1011 = vcmp.ne.s32.totalorder %v961, 0
    %vm1012 = vcmp.ne.s32.totalorder %v968, 0
    %vm1013 = vcmp.ne.s32.totalorder %v975, 0
    %vm1014 = vcmp.ne.s32.totalorder %v982, 0
    %vm1015 = vcmp.ne.s32.totalorder %v989, 0
    %vm1016 = vcmp.ne.s32.totalorder %v996, 0
    %vm1017 = vcmp.ne.s32.totalorder %v1003, 0
    %vm1018 = vcmp.ne.s32.totalorder %v1010, 0
    %vm1019 = vcmp.lt.s32.totalorder %v961, 0
    %vm1020 = vcmp.lt.s32.totalorder %v968, 0
    %vm1021 = vcmp.lt.s32.totalorder %v975, 0
    %vm1022 = vcmp.lt.s32.totalorder %v982, 0
    %vm1023 = vcmp.lt.s32.totalorder %v989, 0
    %vm1024 = vcmp.lt.s32.totalorder %v996, 0
    %vm1025 = vcmp.lt.s32.totalorder %v1003, 0
    %vm1026 = vcmp.lt.s32.totalorder %v1010, 0
    %vm1027 = vmand %vm1019, %vm1011
    %vm1028 = vmand %vm1020, %vm1012
    %vm1029 = vmand %vm1021, %vm1013
    %vm1030 = vmand %vm1022, %vm1014
    %vm1031 = vmand %vm1023, %vm1015
    %vm1032 = vmand %vm1024, %vm1016
    %vm1033 = vmand %vm1025, %vm1017
    %vm1034 = vmand %vm1026, %vm1018
    %v1035 = vadd.s32 %v961, 32
    %v1036 = vadd.s32 %v968, 32
    %v1037 = vadd.s32 %v975, 32
    %v1038 = vadd.s32 %v982, 32
    %v1039 = vadd.s32 %v989, 32
    %v1040 = vadd.s32 %v996, 32
    %v1041 = vadd.s32 %v1003, 32
    %v1042 = vadd.s32 %v1010, 32
    %v1043 = vsel %vm1027, %v1035, %v961
    %v1044 = vsel %vm1028, %v1036, %v968
    %v1045 = vsel %vm1029, %v1037, %v975
    %v1046 = vsel %vm1030, %v1038, %v982
    %v1047 = vsel %vm1031, %v1039, %v989
    %v1048 = vsel %vm1032, %v1040, %v996
    %v1049 = vsel %vm1033, %v1041, %v1003
    %v1050 = vsel %vm1034, %v1042, %v1010
    %vm1051 = vcmp.eq.s32.totalorder %v1043, 0
    %vm1052 = vcmp.eq.s32.totalorder %v1044, 0
    %vm1053 = vcmp.eq.s32.totalorder %v1045, 0
    %vm1054 = vcmp.eq.s32.totalorder %v1046, 0
    %vm1055 = vcmp.eq.s32.totalorder %v1047, 0
    %vm1056 = vcmp.eq.s32.totalorder %v1048, 0
    %vm1057 = vcmp.eq.s32.totalorder %v1049, 0
    %vm1058 = vcmp.eq.s32.totalorder %v1050, 0
    %v1060 = vrot.slane %v954, 7
    %v1069 = vrot.slane %v947, 7
    %v1070 = vrot.slane %v948, 7
    %v1071 = vsel %vm189, %v1069, %v1070
    %v1072 = vrot.slane %v949, 7
    %v1073 = vsel %vm189, %v1070, %v1072
    %v1074 = vrot.slane %v950, 7
    %v1075 = vsel %vm189, %v1072, %v1074
    %v1076 = vrot.slane %v951, 7
    %v1077 = vsel %vm189, %v1074, %v1076
    %v1078 = vrot.slane %v952, 7
    %v1079 = vsel %vm189, %v1076, %v1078
    %v1080 = vrot.slane %v953, 7
    %v1081 = vsel %vm189, %v1078, %v1080
    %v1082 = vsel %vm189, %v1080, %v1060
    %v1091 = vsel %vm189, %v1060, %v1069
    %v1092 = vsel %vm1051, 1, 0
    %v1093 = vsel %vm1052, 1, 0
    %v1094 = vsel %vm1053, 1, 0
    %v1095 = vsel %vm1054, 1, 0
    %v1096 = vsel %vm1055, 1, 0
    %v1097 = vsel %vm1056, 1, 0
    %v1098 = vsel %vm1057, 1, 0
    %v1099 = vsel %vm1058, 1, 0
    %vm1100 = vcmp.eq.s32.totalorder %v1092, 1
    %vm1101 = vcmp.eq.s32.totalorder %v1093, 1
    %vm1102 = vcmp.eq.s32.totalorder %v1094, 1
    %vm1103 = vcmp.eq.s32.totalorder %v1095, 1
    %vm1104 = vcmp.eq.s32.totalorder %v1096, 1
    %vm1105 = vcmp.eq.s32.totalorder %v1097, 1
    %vm1106 = vcmp.eq.s32.totalorder %v1098, 1
    %vm1107 = vcmp.eq.s32.totalorder %v1099, 1
    %v1108 = vsel %vm1100, 0.0, %v1091
    %v1109 = vsel %vm1101, 0.0, %v1071
    %v1110 = vsel %vm1102, 0.0, %v1073
    %v1111 = vsel %vm1103, 0.0, %v1075
    %v1112 = vsel %vm1104, 0.0, %v1077
    %v1113 = vsel %vm1105, 0.0, %v1079
    %v1114 = vsel %vm1106, 0.0, %v1081
    %v1115 = vsel %vm1107, 0.0, %v1082
    %vm1116 = vcmp.eq.s32.totalorder %v1043, 31
    %vm1117 = vcmp.eq.s32.totalorder %v1044, 31
    %vm1118 = vcmp.eq.s32.totalorder %v1045, 31
    %vm1119 = vcmp.eq.s32.totalorder %v1046, 31
    %vm1120 = vcmp.eq.s32.totalorder %v1047, 31
    %vm1121 = vcmp.eq.s32.totalorder %v1048, 31
    %vm1122 = vcmp.eq.s32.totalorder %v1049, 31
    %vm1123 = vcmp.eq.s32.totalorder %v1050, 31
    %v1124 = vrot.slane %v947, 1
    %v1125 = vrot.slane %v948, 1
    %v1126 = vsel %vm203, %v1124, %v1125
    %v1127 = vrot.slane %v949, 1
    %v1128 = vsel %vm203, %v1125, %v1127
    %v1129 = vrot.slane %v950, 1
    %v1130 = vsel %vm203, %v1127, %v1129
    %v1131 = vrot.slane %v951, 1
    %v1132 = vsel %vm203, %v1129, %v1131
    %v1133 = vrot.slane %v952, 1
    %v1134 = vsel %vm203, %v1131, %v1133
    %v1135 = vrot.slane %v953, 1
    %v1136 = vsel %vm203, %v1133, %v1135
    %v1137 = vrot.slane %v954, 1
    %v1138 = vsel %vm203, %v1135, %v1137
    %v1148 = vsel %vm203, %v1137, %v1124
    %v1149 = vsel %vm1116, 1, 0
    %v1150 = vsel %vm1117, 1, 0
    %v1151 = vsel %vm1118, 1, 0
    %v1152 = vsel %vm1119, 1, 0
    %v1153 = vsel %vm1120, 1, 0
    %v1154 = vsel %vm1121, 1, 0
    %v1155 = vsel %vm1122, 1, 0
    %v1156 = vsel %vm1123, 1, 0
    %vm1157 = vcmp.eq.s32.totalorder %v1149, 1
    %vm1158 = vcmp.eq.s32.totalorder %v1150, 1
    %vm1159 = vcmp.eq.s32.totalorder %v1151, 1
    %vm1160 = vcmp.eq.s32.totalorder %v1152, 1
    %vm1161 = vcmp.eq.s32.totalorder %v1153, 1
    %vm1162 = vcmp.eq.s32.totalorder %v1154, 1
    %vm1163 = vcmp.eq.s32.totalorder %v1155, 1
    %vm1164 = vcmp.eq.s32.totalorder %v1156, 1
    %v1165 = vsel %vm1157, 0.0, %v1126
    %v1166 = vsel %vm1158, 0.0, %v1128
    %v1167 = vsel %vm1159, 0.0, %v1130
    %v1168 = vsel %vm1160, 0.0, %v1132
    %v1169 = vsel %vm1161, 0.0, %v1134
    %v1170 = vsel %vm1162, 0.0, %v1136
    %v1171 = vsel %vm1163, 0.0, %v1138
    %v1172 = vsel %vm1164, 0.0, %v1148
    %1173 = vrot.lane.b32.xlu0 %v947, 16
    %v1174 = vpop.permute.xlu0 %1173
    %1175 = vrot.lane.b32.xlu0 %v948, 16
    %v1176 = vpop.permute.xlu0 %1175
    %1177 = vrot.lane.b32.xlu0 %v949, 16
    %v1178 = vpop.permute.xlu0 %1177
    %1179 = vrot.lane.b32.xlu0 %v950, 16
    %v1180 = vpop.permute.xlu0 %1179
    %1181 = vrot.lane.b32.xlu0 %v951, 16
    %v1182 = vpop.permute.xlu0 %1181
    %1183 = vrot.lane.b32.xlu0 %v952, 16
    %v1184 = vpop.permute.xlu0 %1183
    %1185 = vrot.lane.b32.xlu0 %v953, 16
    %v1186 = vpop.permute.xlu0 %1185
    %1187 = vrot.lane.b32.xlu0 %v954, 16
    %v1188 = vpop.permute.xlu0 %1187
    %1205 = vrot.lane.b32.xlu0 %v1165, 32
    %v1206 = vpop.permute.xlu0 %1205
    %1207 = vrot.lane.b32.xlu0 %v1166, 32
    %v1208 = vpop.permute.xlu0 %1207
    %1209 = vrot.lane.b32.xlu0 %v1167, 32
    %v1210 = vpop.permute.xlu0 %1209
    %1211 = vrot.lane.b32.xlu0 %v1168, 32
    %v1212 = vpop.permute.xlu0 %1211
    %1213 = vrot.lane.b32.xlu0 %v1169, 32
    %v1214 = vpop.permute.xlu0 %1213
    %1215 = vrot.lane.b32.xlu0 %v1170, 32
    %v1216 = vpop.permute.xlu0 %1215
    %1217 = vrot.lane.b32.xlu0 %v1171, 32
    %v1218 = vpop.permute.xlu0 %1217
    %1219 = vrot.lane.b32.xlu0 %v1172, 32
    %v1220 = vpop.permute.xlu0 %1219
    %v1229 = vsel %vm126, %v1108, %v1174
    %v1230 = vsel %vm126, %v1109, %v1176
    %v1231 = vsel %vm126, %v1110, %v1178
    %v1232 = vsel %vm126, %v1111, %v1180
    %v1233 = vsel %vm126, %v1112, %v1182
    %v1234 = vsel %vm126, %v1113, %v1184
    %v1235 = vsel %vm126, %v1114, %v1186
    %v1236 = vsel %vm126, %v1115, %v1188
    %v1237 = vsel %vm231, %v1229, %v1206
    %v1238 = vsel %vm231, %v1230, %v1208
    %v1239 = vsel %vm231, %v1231, %v1210
    %v1240 = vsel %vm231, %v1232, %v1212
    %v1241 = vsel %vm231, %v1233, %v1214
    %v1242 = vsel %vm231, %v1234, %v1216
    %v1243 = vsel %vm231, %v1235, %v1218
    %v1244 = vsel %vm231, %v1236, %v1220
    %1246 = vset.pattern.permute.xlu0 0
    %1247 = vperm.xlu0 %1246, %v55
    %v1248 = vpop.permute.xlu0 %1247
    %v1251 = vsel %vm268, %v47, 0
    %v1254 = vsel %vm268, %v1237, 0
    %v1257 = vsel %vm268, %v1238, 0
    %v1260 = vsel %vm268, %v1239, 0
    %v1263 = vsel %vm268, %v1240, 0
    %v1266 = vsel %vm268, %v1241, 0
    %v1269 = vsel %vm268, %v1242, 0
    %v1272 = vsel %vm268, %v1243, 0
    %v1275 = vsel %vm268, %v1244, 0
    %1277 = vmatpush.xpose.msra.mxu0 0.0
    %1278 = vmatpush.xpose.msra.mxu0 0.0
    %1279 = vmatpush.xpose.msra.mxu0 0.0
    %1280 = vmatpush.xpose.msra.mxu0 0.0
    %1281 = vmatpush.xpose.msra.mxu0 0.0
    %1282 = vmatpush.xpose.msra.mxu0 0.0
    %1283 = vmatpush.xpose.msra.mxu0 0.0
    %1284 = vmatpush.xpose.msra.mxu0 0.0
    %1285 = vmatpush.xpose.msra.mxu0 %v1275
    %1286 = vmatpush.xpose.msra.mxu0 %v1272
    %1287 = vmatpush.xpose.msra.mxu0 %v1269
    %1288 = vmatpush.xpose.msra.mxu0 %v1266
    %1289 = vmatpush.xpose.msra.mxu0 %v1263
    %1290 = vmatpush.xpose.msra.mxu0 %v1260
    %1291 = vmatpush.xpose.msra.mxu0 %v1257
    %1292 = vmatpush.xpose.msra.mxu0 %v1254
    %1293 = vmatmul.f32.gmra.mxu0 %v1251
    %v1294 = vpop.f32.mrf.mxu0
    %v1295 = vadd.f32 %v1248, %v1294
    %1296 = vdwg.mxu0
    %1297 = vst.msk [vmem:[#allocation2] sm:$0xff] %vm231, %v1295
    %1299 = vrot.lane.b32.xlu0 %v1295, 96
    %v1300 = vpop.permute.xlu0 %1299
    %s1302 = scalar_lea.vmem [#allocation2], 8
    %1303 = vst.msk [vmem:[%s1302] sm:$0xff] %vm231, %v1300
    // Predicated region
    $region14: #{decoder_forward.1} parent=1 // pred_check
      _
    $region15: #{decoder_forward.1} parent=1 // pred_check_branch
      %1305 = sbr.rel (0) target = $region17
    $region16: #{decoder_forward.1} parent=1 // pred_region
      %1307 = vsyncadd [#allocation3], 0
      %s1308 = sshll.u32 [#allocation2], 4
      %s1309 = int_to_ptr.vmem [resolvable:$true] %s1308
      %s1310 = sshll.u32 %s3, 4
      %s1311 = int_to_ptr.hbm [resolvable:$true] %s1310
      %1316 = dma.vmem_to_hbm [thread:$0]  %s1309, 256, %s1311, [#allocation3], 128, 128, 8
    $region17: #{decoder_forward.1} parent=1 // pred_fallthru
      _
    // Predicated region
    $region18: #{decoder_forward.1} parent=1 // pred_check
      _
    $region19: #{decoder_forward.1} parent=1 // pred_check_branch
      %1318 = sbr.rel (0) target = $region21
    $region20: #{decoder_forward.1} parent=1 // pred_region
      %1320 = dma.done [#allocation3], 256
    $region21: #{decoder_forward.1} parent=1 // pred_fallthru
      _
    %1321 = vsyncpa [#allocation3], 1

</llo_original>
